<compile_context>
chip_gen: v7x
topology: tpu7x:2x2x1
jax: 0.10.0
libtpu: 0.0.40
codegen_flags: <defaults>
</compile_context>

<pallas_src>
import functools

import jax
import jax.numpy as jnp
from jax.experimental import pallas as pl
from jax.experimental.pallas import tpu as pltpu


# ----------------------------------------------------------------------------
# Per-layer GCN kernel: (adj_tile @ h) @ W + b -> PReLU [-> ReLU -> BN]
# plus per-tile partial max-pool over nodes.
# ----------------------------------------------------------------------------
def _gcn_layer_kernel(h_ref, adj_ref, w_ref, b_ref, a_ref, ho_ref, po_ref, *,
                      relu_bn):
    # h_ref   [B, N, Din]   f32   (resident, constant index map)
    # adj_ref [B, TR, N]    bf16  (streamed node-row tile)
    # w_ref   [Din, Dout]   bf16
    # b_ref   [1, Dout]     f32
    # a_ref   [1, 1]        f32   PReLU slope
    # ho_ref  [B, TR, Dout] f32   layer output tile
    # po_ref  [1, B, Dout]  f32   per-tile max over nodes
    B, tr, _ = adj_ref.shape
    din = h_ref.shape[-1]
    dout = w_ref.shape[-1]

    # aggregate-then-transform:  adj @ (h @ W) == (adj @ h) @ W
    agg = jnp.einsum(
        "brn,bnd->brd", adj_ref[...], h_ref[...].astype(jnp.bfloat16),
        preferred_element_type=jnp.float32)                         # [B,TR,Din]
    out = jnp.dot(
        agg.reshape(B * tr, din).astype(jnp.bfloat16), w_ref[...],
        preferred_element_type=jnp.float32).reshape(B, tr, dout)
    out = out + b_ref[...]                                          # f32 bias

    a = a_ref[0, 0]
    out = jnp.where(out >= 0.0, out, a * out)                       # exact PReLU

    if relu_bn:
        out = jnp.maximum(out, 0.0)                                 # ReLU
        # Fresh training-mode BatchNorm1d(num_nodes): per-node stats over
        # (batch, feature).  Tile-local: the tile holds the full batch and the
        # full feature extent for its nodes.  weight=1, bias=0, eps=1e-5.
        mean = jnp.mean(out, axis=(0, 2), keepdims=True)            # [1,TR,1]
        diff = out - mean
        var = jnp.mean(diff * diff, axis=(0, 2), keepdims=True)
        out = diff * jax.lax.rsqrt(var + 1e-5)

    ho_ref[...] = out
    po_ref[...] = jnp.expand_dims(jnp.max(out, axis=1), 0)          # [1,B,Dout]


def _gcn_layer(h, adj_b, w, b, a, *, relu_bn, node_tile=8):
    """One GCN layer (+ReLU+BN if relu_bn) with a node-row-tile grid."""
    B, N, din = h.shape
    dout = w.shape[1]
    tr = node_tile if (N % node_tile == 0) else N
    nt = N // tr

    w_b = w.astype(jnp.bfloat16)
    b2 = b.reshape(1, dout)
    a2 = a.reshape(1, 1)

    flops = 2 * B * N * N * din + 2 * B * N * din * dout
    bytes_accessed = (adj_b.size * 2 + h.size * 4 + w.size * 2 + b.size * 4
                      + B * N * dout * 4 + nt * B * dout * 4)

    # Explicit scoped-VMEM budget: double-buffered streamed adj tile plus the
    # resident operands / output tiles, with headroom for f32 temporaries.
    need = (2 * B * tr * N * 2            # adj tile (bf16), double buffered
            + 2 * B * N * din * 4         # resident h
            + 2 * din * dout * 2 + 2 * dout * 4
            + 2 * B * tr * dout * 4       # output tile
            + 2 * B * dout * 4            # pooled tile
            + 4 * B * tr * max(din, dout) * 4)
    vmem_limit = int(min(max(4 * need, 8 * 1024 * 1024), 64 * 1024 * 1024))

    h_out, pooled_part = pl.pallas_call(
        functools.partial(_gcn_layer_kernel, relu_bn=relu_bn),
        grid=(nt,),
        in_specs=[
            pl.BlockSpec((B, N, din), lambda t: (0, 0, 0)),   # h: resident
            pl.BlockSpec((B, tr, N), lambda t: (0, t, 0)),    # adj: streamed tiles
            pl.BlockSpec((din, dout), lambda t: (0, 0)),
            pl.BlockSpec((1, dout), lambda t: (0, 0)),
            pl.BlockSpec((1, 1), lambda t: (0, 0)),           # PReLU slope
        ],
        out_specs=(
            pl.BlockSpec((B, tr, dout), lambda t: (0, t, 0)),
            pl.BlockSpec((1, B, dout), lambda t: (t, 0, 0)),
        ),
        out_shape=(
            jax.ShapeDtypeStruct((B, N, dout), jnp.float32),
            jax.ShapeDtypeStruct((nt, B, dout), jnp.float32),
        ),
        compiler_params=pltpu.CompilerParams(
            dimension_semantics=("parallel",),
            vmem_limit_bytes=vmem_limit,
        ),
        cost_estimate=pl.CostEstimate(
            flops=flops,
            transcendentals=N if relu_bn else 0,
            bytes_accessed=bytes_accessed,
        ),
    )(h, adj_b, w_b, b2, a2)

    # Tiny cross-tile finalize of the node max-pool ("second pass").
    pooled = jnp.max(pooled_part, axis=0)                         # [B, Dout]
    return h_out, pooled


# ----------------------------------------------------------------------------
# Prediction head: Linear on the concatenated pooled features, lane-dense out.
# ----------------------------------------------------------------------------
def _pred_kernel(f_ref, w_ref, b_ref, o_ref):
    o_ref[...] = (
        jnp.dot(f_ref[...].astype(jnp.bfloat16), w_ref[...],
                preferred_element_type=jnp.float32)
        + b_ref[...]
    )


def _pred_linear(feats, wp, bp):
    B, P = feats.shape
    L = wp.shape[1]
    l_pad = ((L + 127) // 128) * 128      # lane-dense output slab (full vst)
    wp_pad = jnp.zeros((P, l_pad), jnp.bfloat16).at[:, :L].set(
        wp.astype(jnp.bfloat16))
    bp_pad = jnp.zeros((1, l_pad), jnp.float32).at[:, :L].set(bp.reshape(1, L))

    vmem = pl.BlockSpec(memory_space=pltpu.MemorySpace.VMEM)
    out = pl.pallas_call(
        _pred_kernel,
        out_shape=jax.ShapeDtypeStruct((B, l_pad), jnp.float32),
        in_specs=[vmem, vmem, vmem],
        out_specs=vmem,
    )(feats, wp_pad, bp_pad)
    return out[:, :L]


# ----------------------------------------------------------------------------
# Full forward
# ----------------------------------------------------------------------------
@jax.jit
def gcn_encoder_graph_forward(params, x, adj):
    # Cast adj once to bf16: halves the dominant streamed HBM traffic; matmuls
    # accumulate in f32.
    adj_b = adj.astype(jnp.bfloat16)

    pooled = []
    wf, bf_, af = params["first"]
    h, p = _gcn_layer(x, adj_b, wf, bf_, af, relu_bn=True)
    pooled.append(p)
    for (w, b, a) in params["block"]:
        h, p = _gcn_layer(h, adj_b, w, b, a, relu_bn=True)
        pooled.append(p)
    wl, bl, al = params["last"]
    _, p = _gcn_layer(h, adj_b, wl, bl, al, relu_bn=False)   # no ReLU / BN
    pooled.append(p)

    feats = jnp.concatenate(pooled, axis=1)     # tiny wrapper-side layout op
    wp, bp = params["pred"]
    return _pred_linear(feats, wp, bp)


# ----------------------------------------------------------------------------
# Parameters (deterministic synthetic init, matching torch module shapes)
# ----------------------------------------------------------------------------
def _xavier_uniform_t(key, fan_in, fan_out):
    # torch nn.Linear weight is [out, in] with xavier_uniform; stored transposed
    # as [in, out] so the kernel does x @ W.
    bound = (6.0 / (fan_in + fan_out)) ** 0.5
    return jax.random.uniform(key, (fan_in, fan_out), jnp.float32, -bound, bound)


def init_params(key, input_dim, hidden_dim, embedding_dim, label_dim, num_layers):
    ks = list(jax.random.split(key, num_layers + 1))
    params = {}
    params["first"] = (
        _xavier_uniform_t(ks[0], input_dim, hidden_dim),
        jnp.zeros((hidden_dim,), jnp.float32),
        jnp.array(0.25, jnp.float32),
    )
    params["block"] = []
    for i in range(num_layers - 2):
        params["block"].append(
            (
                _xavier_uniform_t(ks[1 + i], hidden_dim, hidden_dim),
                jnp.zeros((hidden_dim,), jnp.float32),
                jnp.array(0.25, jnp.float32),
            )
        )
    params["last"] = (
        _xavier_uniform_t(ks[num_layers - 1], hidden_dim, embedding_dim),
        jnp.zeros((embedding_dim,), jnp.float32),
        jnp.array(0.25, jnp.float32),
    )
    pred_input_dim = hidden_dim * (num_layers - 1) + embedding_dim
    kw, kb = jax.random.split(ks[num_layers])
    bound = 1.0 / (pred_input_dim ** 0.5)
    params["pred"] = (
        jax.random.uniform(kw, (pred_input_dim, label_dim), jnp.float32, -bound, bound),
        jax.random.uniform(kb, (label_dim,), jnp.float32, -bound, bound),
    )
    return params


# ----------------------------------------------------------------------------
# References.  (1) mirrors the kernel's bf16-operand / f32-accumulate math
# (tight check); (2) pure f32 PyTorch semantics (loose check, bounds the bf16
# operand rounding accumulated through 3 layers + BN).
# ----------------------------------------------------------------------------
def _reference_forward_bf16(params, x, adj):
    adj_b = adj.astype(jnp.bfloat16)

    def gcn(h, w, b):
        agg = jnp.einsum("bnm,bmd->bnd", adj_b, h.astype(jnp.bfloat16),
                         preferred_element_type=jnp.float32)
        out = jnp.einsum("bnd,dk->bnk", agg.astype(jnp.bfloat16),
                         w.astype(jnp.bfloat16),
                         preferred_element_type=jnp.float32)
        return out + b

    def prelu(v, a):
        return jnp.where(v >= 0.0, v, a * v)

    def bn(v):
        mean = v.mean(axis=(0, 2), keepdims=True)
        diff = v - mean
        var = (diff * diff).mean(axis=(0, 2), keepdims=True)
        return diff * jax.lax.rsqrt(var + 1e-5)

    pooled = []
    wf, bf_, af = params["first"]
    h = bn(jnp.maximum(prelu(gcn(x, wf, bf_), af), 0.0))
    pooled.append(h.max(axis=1))
    for (w, b, a) in params["block"]:
        h = bn(jnp.maximum(prelu(gcn(h, w, b), a), 0.0))
        pooled.append(h.max(axis=1))
    wl, bl, al = params["last"]
    h = prelu(gcn(h, wl, bl), al)
    pooled.append(h.max(axis=1))
    feats = jnp.concatenate(pooled, axis=1)
    wp, bp = params["pred"]
    return jnp.dot(feats.astype(jnp.bfloat16), wp.astype(jnp.bfloat16),
                   preferred_element_type=jnp.float32) + bp


def _reference_forward_f32(params, x, adj):
    def gcn(h, w, b):
        ft = jnp.einsum("bnd,dh->bnh", h, w)
        return jnp.einsum("bnm,bmh->bnh", adj, ft) + b

    def prelu(v, a):
        return jnp.where(v >= 0.0, v, a * v)

    def bn(v):
        mean = v.mean(axis=(0, 2), keepdims=True)
        var = ((v - mean) ** 2).mean(axis=(0, 2), keepdims=True)
        return (v - mean) / jnp.sqrt(var + 1e-5)

    pooled = []
    wf, bf_, af = params["first"]
    h = bn(jnp.maximum(prelu(gcn(x, wf, bf_), af), 0.0))
    pooled.append(h.max(axis=1))
    for (w, b, a) in params["block"]:
        h = bn(jnp.maximum(prelu(gcn(h, w, b), a), 0.0))
        pooled.append(h.max(axis=1))
    wl, bl, al = params["last"]
    h = prelu(gcn(h, wl, bl), al)
    pooled.append(h.max(axis=1))
    feats = jnp.concatenate(pooled, axis=1)
    wp, bp = params["pred"]
    return feats @ wp + bp


# ----------------------------------------------------------------------------
if __name__ == "__main__":
    B, N = 2, 16                 # batch, max nodes
    input_dim, hidden_dim, embedding_dim = 8, 32, 16
    label_dim, num_layers = 4, 3

    key = jax.random.PRNGKey(0)
    kx, kadj, kp = jax.random.split(key, 3)

    x = jax.random.normal(kx, (B, N, input_dim), dtype=jnp.float32)
    # simple dense symmetric non-negative adjacency with self loops
    a_raw = jax.random.uniform(kadj, (B, N, N), dtype=jnp.float32)
    adj = (a_raw + jnp.swapaxes(a_raw, 1, 2)) * 0.5 + jnp.eye(N, dtype=jnp.float32)

    params = init_params(kp, input_dim, hidden_dim, embedding_dim, label_dim,
                         num_layers)

    ypred = gcn_encoder_graph_forward(params, x, adj)
    jax.block_until_ready(ypred)

    assert ypred.shape == (B, label_dim), (ypred.shape, (B, label_dim))
    assert bool(jnp.all(jnp.isfinite(ypred)))

    # Tight check vs a reference that mirrors the kernel's bf16/f32-acc math.
    ref_mixed = _reference_forward_bf16(params, x, adj)
    assert bool(jnp.allclose(ypred, ref_mixed, atol=1e-2, rtol=1e-2)), (
        ypred, ref_mixed)

    # Loose check vs the pure-f32 PyTorch-semantics reference (bf16 operand
    # rounding accumulated over 3 GCN layers + BatchNorm).
    ref_f32 = _reference_forward_f32(params, x, adj)
    assert bool(jnp.allclose(ypred, ref_f32, atol=1e-1, rtol=1e-1)), (
        ypred, ref_f32)

    print("KERNEL_OK")
</pallas_src>

<mosaic_0001>
module attributes {stable_mosaic.version = 11 : i64} {
  func.func @_gcn_layer_kernel(%arg0: i32, %arg1: memref<2x16x8xf32, #tpu.memory_space<vmem>>, %arg2: memref<2x8x16xbf16, #tpu.memory_space<vmem>>, %arg3: memref<8x32xbf16, #tpu.memory_space<vmem>>, %arg4: memref<1x32xf32, #tpu.memory_space<vmem>>, %arg5: memref<1x1xf32, #tpu.memory_space<vmem>>, %arg6: memref<2x8x32xf32, #tpu.memory_space<vmem>>, %arg7: memref<1x2x32xf32, #tpu.memory_space<vmem>>) attributes {dimension_semantics = [#tpu.dimension_semantics<parallel>], iteration_bounds = array<i64: 2>, scalar_prefetch = 0 : i64, scratch_operands = 0 : i64, tpu.core_type = #tpu.core_type<tc>, window_params = [{pipeline_mode = #tpu.pipeline_mode<synchronous>, transform_indices = @transform_0, window_bounds = array<i64: 2, 16, 8>}, {transform_indices = @transform_1, window_bounds = array<i64: 2, 8, 16>}, {pipeline_mode = #tpu.pipeline_mode<synchronous>, transform_indices = @transform_2, window_bounds = array<i64: 8, 32>}, {pipeline_mode = #tpu.pipeline_mode<synchronous>, transform_indices = @transform_3, window_bounds = array<i64: 1, 32>}, {pipeline_mode = #tpu.pipeline_mode<synchronous>, transform_indices = @transform_4, window_bounds = array<i64: 1, 1>}, {transform_indices = @transform_5, window_bounds = array<i64: 2, 8, 32>}, {transform_indices = @transform_6, window_bounds = array<i64: 1, 2, 32>}]} {
    %c0 = arith.constant 0 : index
    %c0_0 = arith.constant 0 : index
    %c0_1 = arith.constant 0 : index
    %0 = vector.load %arg2[%c0, %c0_0, %c0_1] : memref<2x8x16xbf16, #tpu.memory_space<vmem>>, vector<2x8x16xbf16>
    %c0_2 = arith.constant 0 : index
    %c0_3 = arith.constant 0 : index
    %c0_4 = arith.constant 0 : index
    %1 = vector.load %arg1[%c0_2, %c0_3, %c0_4] : memref<2x16x8xf32, #tpu.memory_space<vmem>>, vector<2x16x8xf32>
    %2 = arith.truncf %1 : vector<2x16x8xf32> to vector<2x16x8xbf16>
    "tpu.trace_start"() <{level = 10 : i32, message = "brn,bnd->brd"}> : () -> ()
    %cst = arith.constant dense<0.000000e+00> : vector<2x8x8xf32>
    %3 = tpu.matmul %0, %2, %cst {dimension_numbers = #tpu.dot_dimension_numbers<[2], [1], [1], [2], [0, 0, 0, 1, 1, 2], [0], [0]>} : vector<2x8x16xbf16>, vector<2x16x8xbf16>, vector<2x8x8xf32> -> vector<2x8x8xf32>
    "tpu.trace_stop"() : () -> ()
    %4 = vector.shape_cast %3 : vector<2x8x8xf32> to vector<16x8xf32>
    %5 = arith.truncf %4 : vector<16x8xf32> to vector<16x8xbf16>
    %c0_5 = arith.constant 0 : index
    %c0_6 = arith.constant 0 : index
    %6 = vector.load %arg3[%c0_5, %c0_6] : memref<8x32xbf16, #tpu.memory_space<vmem>>, vector<8x32xbf16>
    %cst_7 = arith.constant dense<0.000000e+00> : vector<16x32xf32>
    %7 = tpu.matmul %5, %6, %cst_7 {dimension_numbers = #tpu.dot_dimension_numbers<[1], [0], [0], [1], [0, 0, 1, 1], [], []>} : vector<16x8xbf16>, vector<8x32xbf16>, vector<16x32xf32> -> vector<16x32xf32>
    %8 = vector.shape_cast %7 : vector<16x32xf32> to vector<2x8x32xf32>
    %c0_8 = arith.constant 0 : index
    %c0_9 = arith.constant 0 : index
    %9 = vector.load %arg4[%c0_8, %c0_9] : memref<1x32xf32, #tpu.memory_space<vmem>>, vector<1x32xf32>
    %10 = vector.shape_cast %9 : vector<1x32xf32> to vector<1x1x32xf32>
    %11 = vector.broadcast %10 : vector<1x1x32xf32> to vector<2x8x32xf32>
    %12 = arith.addf %8, %11 : vector<2x8x32xf32>
    %c0_10 = arith.constant 0 : index
    %c0_11 = arith.constant 0 : index
    %13 = vector.load %arg5[%c0_10, %c0_11] : memref<1x1xf32, #tpu.memory_space<vmem>>, vector<1x1xf32>
    %14 = vector.extract %13[0, 0] : f32 from vector<1x1xf32>
    %cst_12 = arith.constant 0.000000e+00 : f32
    %15 = vector.broadcast %cst_12 : f32 to vector<2x8x32xf32>
    %16 = arith.cmpf oge, %12, %15 : vector<2x8x32xf32>
    %17 = vector.broadcast %14 : f32 to vector<2x8x32xf32>
    %18 = arith.mulf %17, %12 : vector<2x8x32xf32>
    %19 = arith.select %16, %12, %18 : vector<2x8x32xi1>, vector<2x8x32xf32>
    %cst_13 = arith.constant 0.000000e+00 : f32
    %20 = vector.broadcast %cst_13 : f32 to vector<2x8x32xf32>
    %21 = arith.maximumf %19, %20 : vector<2x8x32xf32>
    %cst_14 = arith.constant dense<0.000000e+00> : vector<8xf32>
    %22 = vector.multi_reduction <add>, %21, %cst_14 [0, 2] : vector<2x8x32xf32> to vector<8xf32>
    %23 = vector.shape_cast %22 : vector<8xf32> to vector<1x8x1xf32>
    %cst_15 = arith.constant 6.400000e+01 : f32
    %24 = vector.broadcast %cst_15 : f32 to vector<1x8x1xf32>
    %25 = arith.divf %23, %24 : vector<1x8x1xf32>
    %26 = vector.broadcast %25 : vector<1x8x1xf32> to vector<2x8x32xf32>
    %27 = arith.subf %21, %26 : vector<2x8x32xf32>
    %28 = arith.mulf %27, %27 : vector<2x8x32xf32>
    %cst_16 = arith.constant dense<0.000000e+00> : vector<8xf32>
    %29 = vector.multi_reduction <add>, %28, %cst_16 [0, 2] : vector<2x8x32xf32> to vector<8xf32>
    %30 = vector.shape_cast %29 : vector<8xf32> to vector<1x8x1xf32>
    %cst_17 = arith.constant 6.400000e+01 : f32
    %31 = vector.broadcast %cst_17 : f32 to vector<1x8x1xf32>
    %32 = arith.divf %30, %31 : vector<1x8x1xf32>
    %cst_18 = arith.constant 9.99999974E-6 : f32
    %33 = vector.broadcast %cst_18 : f32 to vector<1x8x1xf32>
    %34 = arith.addf %32, %33 : vector<1x8x1xf32>
    %35 = math.rsqrt %34 : vector<1x8x1xf32>
    %36 = vector.broadcast %35 : vector<1x8x1xf32> to vector<2x8x32xf32>
    %37 = arith.mulf %27, %36 : vector<2x8x32xf32>
    %c0_19 = arith.constant 0 : index
    %c0_20 = arith.constant 0 : index
    %c0_21 = arith.constant 0 : index
    %38 = vector.load %arg6[%c0_19, %c0_20, %c0_21] : memref<2x8x32xf32, #tpu.memory_space<vmem>>, vector<2x8x32xf32>
    tpu.vector_store %arg6[%c0_19, %c0_20, %c0_21], %37 {strides = array<i32>} : memref<2x8x32xf32, #tpu.memory_space<vmem>>, vector<2x8x32xf32>,
    %cst_22 = arith.constant dense<0xFF800000> : vector<2x32xf32>
    %39 = vector.multi_reduction <maximumf>, %37, %cst_22 [1] : vector<2x8x32xf32> to vector<2x32xf32>
    %40 = vector.shape_cast %39 : vector<2x32xf32> to vector<1x2x32xf32>
    %c0_23 = arith.constant 0 : index
    %c0_24 = arith.constant 0 : index
    %c0_25 = arith.constant 0 : index
    %41 = vector.load %arg7[%c0_23, %c0_24, %c0_25] : memref<1x2x32xf32, #tpu.memory_space<vmem>>, vector<1x2x32xf32>
    tpu.vector_store %arg7[%c0_23, %c0_24, %c0_25], %40 {strides = array<i32>} : memref<1x2x32xf32, #tpu.memory_space<vmem>>, vector<1x2x32xf32>,
    return
  }
  func.func @transform_0(%arg0: i32) -> (i32, i32, i32) {
    %c0_i32 = arith.constant 0 : i32
    %c0_i32_0 = arith.constant 0 : i32
    %c0_i32_1 = arith.constant 0 : i32
    %c0_i32_2 = arith.constant 0 : i32
    return %c0_i32, %c0_i32_0, %c0_i32_1 : i32, i32, i32
  }
  func.func @transform_1(%arg0: i32) -> (i32, i32, i32) {
    %c0_i32 = arith.constant 0 : i32
    %c0_i32_0 = arith.constant 0 : i32
    %c0_i32_1 = arith.constant 0 : i32
    return %c0_i32, %arg0, %c0_i32_0 : i32, i32, i32
  }
  func.func @transform_2(%arg0: i32) -> (i32, i32) {
    %c0_i32 = arith.constant 0 : i32
    %c0_i32_0 = arith.constant 0 : i32
    %c0_i32_1 = arith.constant 0 : i32
    return %c0_i32, %c0_i32_0 : i32, i32
  }
  func.func @transform_3(%arg0: i32) -> (i32, i32) {
    %c0_i32 = arith.constant 0 : i32
    %c0_i32_0 = arith.constant 0 : i32
    %c0_i32_1 = arith.constant 0 : i32
    return %c0_i32, %c0_i32_0 : i32, i32
  }
  func.func @transform_4(%arg0: i32) -> (i32, i32) {
    %c0_i32 = arith.constant 0 : i32
    %c0_i32_0 = arith.constant 0 : i32
    %c0_i32_1 = arith.constant 0 : i32
    return %c0_i32, %c0_i32_0 : i32, i32
  }
  func.func @transform_5(%arg0: i32) -> (i32, i32, i32) {
    %c0_i32 = arith.constant 0 : i32
    %c0_i32_0 = arith.constant 0 : i32
    %c0_i32_1 = arith.constant 0 : i32
    return %c0_i32, %arg0, %c0_i32_0 : i32, i32, i32
  }
  func.func @transform_6(%arg0: i32) -> (i32, i32, i32) {
    %c0_i32 = arith.constant 0 : i32
    %c0_i32_0 = arith.constant 0 : i32
    %c0_i32_1 = arith.constant 0 : i32
    return %arg0, %c0_i32, %c0_i32_0 : i32, i32, i32
  }
}

module attributes {stable_mosaic.version = 11 : i64} {
  func.func @_gcn_layer_kernel(%arg0: i32, %arg1: memref<2x16x32xf32, #tpu.memory_space<vmem>>, %arg2: memref<2x8x16xbf16, #tpu.memory_space<vmem>>, %arg3: memref<32x16xbf16, #tpu.memory_space<vmem>>, %arg4: memref<1x16xf32, #tpu.memory_space<vmem>>, %arg5: memref<1x1xf32, #tpu.memory_space<vmem>>, %arg6: memref<2x8x16xf32, #tpu.memory_space<vmem>>, %arg7: memref<1x2x16xf32, #tpu.memory_space<vmem>>) attributes {dimension_semantics = [#tpu.dimension_semantics<parallel>], iteration_bounds = array<i64: 2>, scalar_prefetch = 0 : i64, scratch_operands = 0 : i64, tpu.core_type = #tpu.core_type<tc>, window_params = [{pipeline_mode = #tpu.pipeline_mode<synchronous>, transform_indices = @transform_0, window_bounds = array<i64: 2, 16, 32>}, {transform_indices = @transform_1, window_bounds = array<i64: 2, 8, 16>}, {pipeline_mode = #tpu.pipeline_mode<synchronous>, transform_indices = @transform_2, window_bounds = array<i64: 32, 16>}, {pipeline_mode = #tpu.pipeline_mode<synchronous>, transform_indices = @transform_3, window_bounds = array<i64: 1, 16>}, {pipeline_mode = #tpu.pipeline_mode<synchronous>, transform_indices = @transform_4, window_bounds = array<i64: 1, 1>}, {transform_indices = @transform_5, window_bounds = array<i64: 2, 8, 16>}, {transform_indices = @transform_6, window_bounds = array<i64: 1, 2, 16>}]} {
    %c0 = arith.constant 0 : index
    %c0_0 = arith.constant 0 : index
    %c0_1 = arith.constant 0 : index
    %0 = vector.load %arg2[%c0, %c0_0, %c0_1] : memref<2x8x16xbf16, #tpu.memory_space<vmem>>, vector<2x8x16xbf16>
    %c0_2 = arith.constant 0 : index
    %c0_3 = arith.constant 0 : index
    %c0_4 = arith.constant 0 : index
    %1 = vector.load %arg1[%c0_2, %c0_3, %c0_4] : memref<2x16x32xf32, #tpu.memory_space<vmem>>, vector<2x16x32xf32>
    %2 = arith.truncf %1 : vector<2x16x32xf32> to vector<2x16x32xbf16>
    "tpu.trace_start"() <{level = 10 : i32, message = "brn,bnd->brd"}> : () -> ()
    %cst = arith.constant dense<0.000000e+00> : vector<2x8x32xf32>
    %3 = tpu.matmul %0, %2, %cst {dimension_numbers = #tpu.dot_dimension_numbers<[2], [1], [1], [2], [0, 0, 0, 1, 1, 2], [0], [0]>} : vector<2x8x16xbf16>, vector<2x16x32xbf16>, vector<2x8x32xf32> -> vector<2x8x32xf32>
    "tpu.trace_stop"() : () -> ()
    %4 = vector.shape_cast %3 : vector<2x8x32xf32> to vector<16x32xf32>
    %5 = arith.truncf %4 : vector<16x32xf32> to vector<16x32xbf16>
    %c0_5 = arith.constant 0 : index
    %c0_6 = arith.constant 0 : index
    %6 = vector.load %arg3[%c0_5, %c0_6] : memref<32x16xbf16, #tpu.memory_space<vmem>>, vector<32x16xbf16>
    %cst_7 = arith.constant dense<0.000000e+00> : vector<16x16xf32>
    %7 = tpu.matmul %5, %6, %cst_7 {dimension_numbers = #tpu.dot_dimension_numbers<[1], [0], [0], [1], [0, 0, 1, 1], [], []>} : vector<16x32xbf16>, vector<32x16xbf16>, vector<16x16xf32> -> vector<16x16xf32>
    %8 = vector.shape_cast %7 : vector<16x16xf32> to vector<2x8x16xf32>
    %c0_8 = arith.constant 0 : index
    %c0_9 = arith.constant 0 : index
    %9 = vector.load %arg4[%c0_8, %c0_9] : memref<1x16xf32, #tpu.memory_space<vmem>>, vector<1x16xf32>
    %10 = vector.shape_cast %9 : vector<1x16xf32> to vector<1x1x16xf32>
    %11 = vector.broadcast %10 : vector<1x1x16xf32> to vector<2x8x16xf32>
    %12 = arith.addf %8, %11 : vector<2x8x16xf32>
    %c0_10 = arith.constant 0 : index
    %c0_11 = arith.constant 0 : index
    %13 = vector.load %arg5[%c0_10, %c0_11] : memref<1x1xf32, #tpu.memory_space<vmem>>, vector<1x1xf32>
    %14 = vector.extract %13[0, 0] : f32 from vector<1x1xf32>
    %cst_12 = arith.constant 0.000000e+00 : f32
    %15 = vector.broadcast %cst_12 : f32 to vector<2x8x16xf32>
    %16 = arith.cmpf oge, %12, %15 : vector<2x8x16xf32>
    %17 = vector.broadcast %14 : f32 to vector<2x8x16xf32>
    %18 = arith.mulf %17, %12 : vector<2x8x16xf32>
    %19 = arith.select %16, %12, %18 : vector<2x8x16xi1>, vector<2x8x16xf32>
    %c0_13 = arith.constant 0 : index
    %c0_14 = arith.constant 0 : index
    %c0_15 = arith.constant 0 : index
    %20 = vector.load %arg6[%c0_13, %c0_14, %c0_15] : memref<2x8x16xf32, #tpu.memory_space<vmem>>, vector<2x8x16xf32>
    tpu.vector_store %arg6[%c0_13, %c0_14, %c0_15], %19 {strides = array<i32>} : memref<2x8x16xf32, #tpu.memory_space<vmem>>, vector<2x8x16xf32>,
    %cst_16 = arith.constant dense<0xFF800000> : vector<2x16xf32>
    %21 = vector.multi_reduction <maximumf>, %19, %cst_16 [1] : vector<2x8x16xf32> to vector<2x16xf32>
    %22 = vector.shape_cast %21 : vector<2x16xf32> to vector<1x2x16xf32>
    %c0_17 = arith.constant 0 : index
    %c0_18 = arith.constant 0 : index
    %c0_19 = arith.constant 0 : index
    %23 = vector.load %arg7[%c0_17, %c0_18, %c0_19] : memref<1x2x16xf32, #tpu.memory_space<vmem>>, vector<1x2x16xf32>
    tpu.vector_store %arg7[%c0_17, %c0_18, %c0_19], %22 {strides = array<i32>} : memref<1x2x16xf32, #tpu.memory_space<vmem>>, vector<1x2x16xf32>,
    return
  }
  func.func @transform_0(%arg0: i32) -> (i32, i32, i32) {
    %c0_i32 = arith.constant 0 : i32
    %c0_i32_0 = arith.constant 0 : i32
    %c0_i32_1 = arith.constant 0 : i32
    %c0_i32_2 = arith.constant 0 : i32
    return %c0_i32, %c0_i32_0, %c0_i32_1 : i32, i32, i32
  }
  func.func @transform_1(%arg0: i32) -> (i32, i32, i32) {
    %c0_i32 = arith.constant 0 : i32
    %c0_i32_0 = arith.constant 0 : i32
    %c0_i32_1 = arith.constant 0 : i32
    return %c0_i32, %arg0, %c0_i32_0 : i32, i32, i32
  }
  func.func @transform_2(%arg0: i32) -> (i32, i32) {
    %c0_i32 = arith.constant 0 : i32
    %c0_i32_0 = arith.constant 0 : i32
    %c0_i32_1 = arith.constant 0 : i32
    return %c0_i32, %c0_i32_0 : i32, i32
  }
  func.func @transform_3(%arg0: i32) -> (i32, i32) {
    %c0_i32 = arith.constant 0 : i32
    %c0_i32_0 = arith.constant 0 : i32
    %c0_i32_1 = arith.constant 0 : i32
    return %c0_i32, %c0_i32_0 : i32, i32
  }
  func.func @transform_4(%arg0: i32) -> (i32, i32) {
    %c0_i32 = arith.constant 0 : i32
    %c0_i32_0 = arith.constant 0 : i32
    %c0_i32_1 = arith.constant 0 : i32
    return %c0_i32, %c0_i32_0 : i32, i32
  }
  func.func @transform_5(%arg0: i32) -> (i32, i32, i32) {
    %c0_i32 = arith.constant 0 : i32
    %c0_i32_0 = arith.constant 0 : i32
    %c0_i32_1 = arith.constant 0 : i32
    return %c0_i32, %arg0, %c0_i32_0 : i32, i32, i32
  }
  func.func @transform_6(%arg0: i32) -> (i32, i32, i32) {
    %c0_i32 = arith.constant 0 : i32
    %c0_i32_0 = arith.constant 0 : i32
    %c0_i32_1 = arith.constant 0 : i32
    return %arg0, %c0_i32, %c0_i32_0 : i32, i32, i32
  }
}

module attributes {stable_mosaic.version = 11 : i64} {
  func.func @_gcn_layer_kernel(%arg0: i32, %arg1: memref<2x16x32xf32, #tpu.memory_space<vmem>>, %arg2: memref<2x8x16xbf16, #tpu.memory_space<vmem>>, %arg3: memref<32x32xbf16, #tpu.memory_space<vmem>>, %arg4: memref<1x32xf32, #tpu.memory_space<vmem>>, %arg5: memref<1x1xf32, #tpu.memory_space<vmem>>, %arg6: memref<2x8x32xf32, #tpu.memory_space<vmem>>, %arg7: memref<1x2x32xf32, #tpu.memory_space<vmem>>) attributes {dimension_semantics = [#tpu.dimension_semantics<parallel>], iteration_bounds = array<i64: 2>, scalar_prefetch = 0 : i64, scratch_operands = 0 : i64, tpu.core_type = #tpu.core_type<tc>, window_params = [{pipeline_mode = #tpu.pipeline_mode<synchronous>, transform_indices = @transform_0, window_bounds = array<i64: 2, 16, 32>}, {transform_indices = @transform_1, window_bounds = array<i64: 2, 8, 16>}, {pipeline_mode = #tpu.pipeline_mode<synchronous>, transform_indices = @transform_2, window_bounds = array<i64: 32, 32>}, {pipeline_mode = #tpu.pipeline_mode<synchronous>, transform_indices = @transform_3, window_bounds = array<i64: 1, 32>}, {pipeline_mode = #tpu.pipeline_mode<synchronous>, transform_indices = @transform_4, window_bounds = array<i64: 1, 1>}, {transform_indices = @transform_5, window_bounds = array<i64: 2, 8, 32>}, {transform_indices = @transform_6, window_bounds = array<i64: 1, 2, 32>}]} {
    %c0 = arith.constant 0 : index
    %c0_0 = arith.constant 0 : index
    %c0_1 = arith.constant 0 : index
    %0 = vector.load %arg2[%c0, %c0_0, %c0_1] : memref<2x8x16xbf16, #tpu.memory_space<vmem>>, vector<2x8x16xbf16>
    %c0_2 = arith.constant 0 : index
    %c0_3 = arith.constant 0 : index
    %c0_4 = arith.constant 0 : index
    %1 = vector.load %arg1[%c0_2, %c0_3, %c0_4] : memref<2x16x32xf32, #tpu.memory_space<vmem>>, vector<2x16x32xf32>
    %2 = arith.truncf %1 : vector<2x16x32xf32> to vector<2x16x32xbf16>
    "tpu.trace_start"() <{level = 10 : i32, message = "brn,bnd->brd"}> : () -> ()
    %cst = arith.constant dense<0.000000e+00> : vector<2x8x32xf32>
    %3 = tpu.matmul %0, %2, %cst {dimension_numbers = #tpu.dot_dimension_numbers<[2], [1], [1], [2], [0, 0, 0, 1, 1, 2], [0], [0]>} : vector<2x8x16xbf16>, vector<2x16x32xbf16>, vector<2x8x32xf32> -> vector<2x8x32xf32>
    "tpu.trace_stop"() : () -> ()
    %4 = vector.shape_cast %3 : vector<2x8x32xf32> to vector<16x32xf32>
    %5 = arith.truncf %4 : vector<16x32xf32> to vector<16x32xbf16>
    %c0_5 = arith.constant 0 : index
    %c0_6 = arith.constant 0 : index
    %6 = vector.load %arg3[%c0_5, %c0_6] : memref<32x32xbf16, #tpu.memory_space<vmem>>, vector<32x32xbf16>
    %cst_7 = arith.constant dense<0.000000e+00> : vector<16x32xf32>
    %7 = tpu.matmul %5, %6, %cst_7 {dimension_numbers = #tpu.dot_dimension_numbers<[1], [0], [0], [1], [0, 0, 1, 1], [], []>} : vector<16x32xbf16>, vector<32x32xbf16>, vector<16x32xf32> -> vector<16x32xf32>
    %8 = vector.shape_cast %7 : vector<16x32xf32> to vector<2x8x32xf32>
    %c0_8 = arith.constant 0 : index
    %c0_9 = arith.constant 0 : index
    %9 = vector.load %arg4[%c0_8, %c0_9] : memref<1x32xf32, #tpu.memory_space<vmem>>, vector<1x32xf32>
    %10 = vector.shape_cast %9 : vector<1x32xf32> to vector<1x1x32xf32>
    %11 = vector.broadcast %10 : vector<1x1x32xf32> to vector<2x8x32xf32>
    %12 = arith.addf %8, %11 : vector<2x8x32xf32>
    %c0_10 = arith.constant 0 : index
    %c0_11 = arith.constant 0 : index
    %13 = vector.load %arg5[%c0_10, %c0_11] : memref<1x1xf32, #tpu.memory_space<vmem>>, vector<1x1xf32>
    %14 = vector.extract %13[0, 0] : f32 from vector<1x1xf32>
    %cst_12 = arith.constant 0.000000e+00 : f32
    %15 = vector.broadcast %cst_12 : f32 to vector<2x8x32xf32>
    %16 = arith.cmpf oge, %12, %15 : vector<2x8x32xf32>
    %17 = vector.broadcast %14 : f32 to vector<2x8x32xf32>
    %18 = arith.mulf %17, %12 : vector<2x8x32xf32>
    %19 = arith.select %16, %12, %18 : vector<2x8x32xi1>, vector<2x8x32xf32>
    %cst_13 = arith.constant 0.000000e+00 : f32
    %20 = vector.broadcast %cst_13 : f32 to vector<2x8x32xf32>
    %21 = arith.maximumf %19, %20 : vector<2x8x32xf32>
    %cst_14 = arith.constant dense<0.000000e+00> : vector<8xf32>
    %22 = vector.multi_reduction <add>, %21, %cst_14 [0, 2] : vector<2x8x32xf32> to vector<8xf32>
    %23 = vector.shape_cast %22 : vector<8xf32> to vector<1x8x1xf32>
    %cst_15 = arith.constant 6.400000e+01 : f32
    %24 = vector.broadcast %cst_15 : f32 to vector<1x8x1xf32>
    %25 = arith.divf %23, %24 : vector<1x8x1xf32>
    %26 = vector.broadcast %25 : vector<1x8x1xf32> to vector<2x8x32xf32>
    %27 = arith.subf %21, %26 : vector<2x8x32xf32>
    %28 = arith.mulf %27, %27 : vector<2x8x32xf32>
    %cst_16 = arith.constant dense<0.000000e+00> : vector<8xf32>
    %29 = vector.multi_reduction <add>, %28, %cst_16 [0, 2] : vector<2x8x32xf32> to vector<8xf32>
    %30 = vector.shape_cast %29 : vector<8xf32> to vector<1x8x1xf32>
    %cst_17 = arith.constant 6.400000e+01 : f32
    %31 = vector.broadcast %cst_17 : f32 to vector<1x8x1xf32>
    %32 = arith.divf %30, %31 : vector<1x8x1xf32>
    %cst_18 = arith.constant 9.99999974E-6 : f32
    %33 = vector.broadcast %cst_18 : f32 to vector<1x8x1xf32>
    %34 = arith.addf %32, %33 : vector<1x8x1xf32>
    %35 = math.rsqrt %34 : vector<1x8x1xf32>
    %36 = vector.broadcast %35 : vector<1x8x1xf32> to vector<2x8x32xf32>
    %37 = arith.mulf %27, %36 : vector<2x8x32xf32>
    %c0_19 = arith.constant 0 : index
    %c0_20 = arith.constant 0 : index
    %c0_21 = arith.constant 0 : index
    %38 = vector.load %arg6[%c0_19, %c0_20, %c0_21] : memref<2x8x32xf32, #tpu.memory_space<vmem>>, vector<2x8x32xf32>
    tpu.vector_store %arg6[%c0_19, %c0_20, %c0_21], %37 {strides = array<i32>} : memref<2x8x32xf32, #tpu.memory_space<vmem>>, vector<2x8x32xf32>,
    %cst_22 = arith.constant dense<0xFF800000> : vector<2x32xf32>
    %39 = vector.multi_reduction <maximumf>, %37, %cst_22 [1] : vector<2x8x32xf32> to vector<2x32xf32>
    %40 = vector.shape_cast %39 : vector<2x32xf32> to vector<1x2x32xf32>
    %c0_23 = arith.constant 0 : index
    %c0_24 = arith.constant 0 : index
    %c0_25 = arith.constant 0 : index
    %41 = vector.load %arg7[%c0_23, %c0_24, %c0_25] : memref<1x2x32xf32, #tpu.memory_space<vmem>>, vector<1x2x32xf32>
    tpu.vector_store %arg7[%c0_23, %c0_24, %c0_25], %40 {strides = array<i32>} : memref<1x2x32xf32, #tpu.memory_space<vmem>>, vector<1x2x32xf32>,
    return
  }
  func.func @transform_0(%arg0: i32) -> (i32, i32, i32) {
    %c0_i32 = arith.constant 0 : i32
    %c0_i32_0 = arith.constant 0 : i32
    %c0_i32_1 = arith.constant 0 : i32
    %c0_i32_2 = arith.constant 0 : i32
    return %c0_i32, %c0_i32_0, %c0_i32_1 : i32, i32, i32
  }
  func.func @transform_1(%arg0: i32) -> (i32, i32, i32) {
    %c0_i32 = arith.constant 0 : i32
    %c0_i32_0 = arith.constant 0 : i32
    %c0_i32_1 = arith.constant 0 : i32
    return %c0_i32, %arg0, %c0_i32_0 : i32, i32, i32
  }
  func.func @transform_2(%arg0: i32) -> (i32, i32) {
    %c0_i32 = arith.constant 0 : i32
    %c0_i32_0 = arith.constant 0 : i32
    %c0_i32_1 = arith.constant 0 : i32
    return %c0_i32, %c0_i32_0 : i32, i32
  }
  func.func @transform_3(%arg0: i32) -> (i32, i32) {
    %c0_i32 = arith.constant 0 : i32
    %c0_i32_0 = arith.constant 0 : i32
    %c0_i32_1 = arith.constant 0 : i32
    return %c0_i32, %c0_i32_0 : i32, i32
  }
  func.func @transform_4(%arg0: i32) -> (i32, i32) {
    %c0_i32 = arith.constant 0 : i32
    %c0_i32_0 = arith.constant 0 : i32
    %c0_i32_1 = arith.constant 0 : i32
    return %c0_i32, %c0_i32_0 : i32, i32
  }
  func.func @transform_5(%arg0: i32) -> (i32, i32, i32) {
    %c0_i32 = arith.constant 0 : i32
    %c0_i32_0 = arith.constant 0 : i32
    %c0_i32_1 = arith.constant 0 : i32
    return %c0_i32, %arg0, %c0_i32_0 : i32, i32, i32
  }
  func.func @transform_6(%arg0: i32) -> (i32, i32, i32) {
    %c0_i32 = arith.constant 0 : i32
    %c0_i32_0 = arith.constant 0 : i32
    %c0_i32_1 = arith.constant 0 : i32
    return %arg0, %c0_i32, %c0_i32_0 : i32, i32, i32
  }
}

module attributes {stable_mosaic.version = 11 : i64} {
  func.func @_pred_kernel(%arg0: memref<2x80xf32, #tpu.memory_space<vmem>>, %arg1: memref<80x128xbf16, #tpu.memory_space<vmem>>, %arg2: memref<1x128xf32, #tpu.memory_space<vmem>>, %arg3: memref<2x128xf32, #tpu.memory_space<vmem>>) attributes {dimension_semantics = [], scalar_prefetch = 0 : i64, scratch_operands = 0 : i64, tpu.core_type = #tpu.core_type<tc>} {
    %c0 = arith.constant 0 : index
    %c0_0 = arith.constant 0 : index
    %0 = vector.load %arg0[%c0, %c0_0] : memref<2x80xf32, #tpu.memory_space<vmem>>, vector<2x80xf32>
    %1 = arith.truncf %0 : vector<2x80xf32> to vector<2x80xbf16>
    %c0_1 = arith.constant 0 : index
    %c0_2 = arith.constant 0 : index
    %2 = vector.load %arg1[%c0_1, %c0_2] : memref<80x128xbf16, #tpu.memory_space<vmem>>, vector<80x128xbf16>
    %cst = arith.constant dense<0.000000e+00> : vector<2x128xf32>
    %3 = tpu.matmul %1, %2, %cst {dimension_numbers = #tpu.dot_dimension_numbers<[1], [0], [0], [1], [0, 0, 1, 1], [], []>} : vector<2x80xbf16>, vector<80x128xbf16>, vector<2x128xf32> -> vector<2x128xf32>
    %c0_3 = arith.constant 0 : index
    %c0_4 = arith.constant 0 : index
    %4 = vector.load %arg2[%c0_3, %c0_4] : memref<1x128xf32, #tpu.memory_space<vmem>>, vector<1x128xf32>
    %5 = vector.broadcast %4 : vector<1x128xf32> to vector<2x128xf32>
    %6 = arith.addf %3, %5 : vector<2x128xf32>
    %c0_5 = arith.constant 0 : index
    %c0_6 = arith.constant 0 : index
    %7 = vector.load %arg3[%c0_5, %c0_6] : memref<2x128xf32, #tpu.memory_space<vmem>>, vector<2x128xf32>
    tpu.vector_store %arg3[%c0_5, %c0_6], %6 {strides = array<i32>} : memref<2x128xf32, #tpu.memory_space<vmem>>, vector<2x128xf32>,
    return
  }
}

</mosaic_0001>

<llo_original>
// kernel: gcn_encoder_graph_forward.6
$region0: #{gcn_encoder_graph_forward.6}
  #allocation0 [shape = 'u32[]', space=smem, size = 0x4, offset = 0x4, fixed_abs, tag = 'smem constant byte address 0x4 - core index']
  #allocation1 [shape = 'u32[144,128]{1,0:T(1,128)}', space=vmem, size = 0x12000, scoped, tag = 'internal scratch']
  #allocation2 [shape = 'f32[1,1]{1,0:T(1,128)S(1)}', space=vmem, size = 0x200, scoped, tag = 'scoped memory for gcn_encoder_graph_forward.6']
  %s0 = inlined_call_operand.vmem [shape: f32[2,16,32], index: 0, kind: input, shape index: {}]
  %s1 = inlined_call_operand.vmem [shape: bf16[2,16,16], index: 1, kind: input, shape index: {}]
  %s2 = inlined_call_operand.vmem [shape: bf16[32,16], index: 2, kind: input, shape index: {}]
  %s3 = inlined_call_operand.vmem [shape: f32[1,16], index: 3, kind: input, shape index: {}]
  %s4 = inlined_call_operand.<no memory space> [shape: f32[1,1], index: 4, kind: input, shape index: {}]
  %s5 = inlined_call_operand.hbm [shape: f32[2,16,16], index: 5, kind: output, shape index: {0}]
  %s6 = inlined_call_operand.vmem [shape: f32[2,2,16], index: 6, kind: output, shape index: {1}]
  %7 = xla_tuple %s5, %s6
  %s8 = sld [smem:[#allocation0]]
  $region102: #{gcn_encoder_graph_forward.6} parent=0
    _
  %s10 = ssub.s32 1, %s8
  %s11 = scalar_select 0, %s10, %s8
  %v12 = vstv %s4
  %13 = vst [vmem:[#allocation2] sm:$0x1] %v12
  $region1: #{gcn_encoder_graph_forward.6} parent=0
    #allocation3 [shape = 'u8[8192]{0}', space=vmem, size = 0x2000, scoped, tag = 'input window, operand 1']
    #allocation4 [shape = 'u8[16384]{0}', space=vmem, size = 0x4000, scoped, tag = 'output window, operand 0']
    #allocation5 [shape = 's32[2]{0}', space=sflag, size = 0x8, scoped, tag = 'scoped memory for gcn_encoder_graph_forward.6']
    %14 = vsyncpa [#allocation5], 0
    %s15 = scalar_lea.sflag [#allocation5], 1
    %16 = vsyncpa %s15, 0
    loop: start=0, step=1, limit=4
    $region2: #{gcn_encoder_graph_forward.6} parent=1 // loop_pre_header
      _
    $region3: #{gcn_encoder_graph_forward.6} parent=1 // loop_header
      %s18 = sphi 0, %s22
      %p19 = scmp.ge.s32.totalorder %s18, 4
      %s26 = sphi 0, %s26
      %s28 = sphi 0, %s26
      %s29 = sphi 0, %s28
      %s43 = sphi 0, %s29
      %s49 = sphi 0, %s51
      %s52 = sphi 0, %s49
      %s53 = sphi 0, %s52
      %s69 = sphi 0, %s53
      %s73 = sphi 0, %s73
      %s75 = sphi 0, %s73
      %s76 = sphi 0, %s75
      %s90 = sphi 0, %s76
      %s94 = sphi 0, %s94
      %s96 = sphi 0, %s94
      %s97 = sphi 0, %s96
      %s111 = sphi 0, %s97
      %s115 = sphi 0, %s115
      %s117 = sphi 0, %s115
      %s118 = sphi 0, %s117
      %s132 = sphi 0, %s118
      %s138 = sphi 0, %s140
      %s141 = sphi 0, %s138
      %s142 = sphi 0, %s141
      %s158 = sphi 0, %s142
      %s164 = sphi 0, %s166
      %s167 = sphi 0, %s164
      %s168 = sphi 0, %s167
      %s184 = sphi 0, %s168
    $region4: #{gcn_encoder_graph_forward.6} parent=1 // loop_header_branch
      %21 = sbr.rel (%p19) target = $region8
    $region5: #{gcn_encoder_graph_forward.6} parent=1 // loop_body
      %s23 = ssub.s32 %s18, 1
      %s24 = ssub.s32 %s18, 2
      %s25 = sadd.s32 %s18, 1
      %s27 = sadd.s32 %s26, 1
      %p30 = scmp.eq.s32.totalorder %s18, 1
      %p31 = scmp.ne.s32.totalorder %s26, %s28
      %p32 = scmp.eq.s32.totalorder %s18, 0
      %p33 = por %p31, %p32
      %p34 = scmp.ne.s32.totalorder %s26, %s28
      %p35 = scmp.eq.s32.totalorder %s23, 1
      %p36 = por %p34, %p35
      %p37 = scmp.ne.s32.totalorder %s28, %s29
      %p38 = scmp.eq.s32.totalorder %s23, 0
      %p39 = por %p37, %p38
      %p40 = scmp.ne.s32.totalorder %s28, %s29
      %p41 = scmp.eq.s32.totalorder %s24, 1
      %p42 = por %p40, %p41
      %p44 = scmp.ne.s32.totalorder %s29, %s43
      %p45 = scmp.eq.s32.totalorder %s24, 0
      %p46 = por %p44, %p45
      %s47 = ssub.s32 %s18, %s25
      %p48 = scmp.eq.s32.totalorder %s47, 0
      %s50 = sadd.s32 %s49, 1
      %s51 = scalar_select %p48, %s49, %s50
      %p54 = pneg %p48
      %p55 = scmp.eq.s32.totalorder %s18, 1
      %p56 = por %p54, %p55
      %p57 = scmp.ne.s32.totalorder %s49, %s52
      %p58 = scmp.eq.s32.totalorder %s18, 0
      %p59 = por %p57, %p58
      %p60 = scmp.ne.s32.totalorder %s49, %s52
      %p61 = scmp.eq.s32.totalorder %s23, 1
      %p62 = por %p60, %p61
      %p63 = scmp.ne.s32.totalorder %s52, %s53
      %p64 = scmp.eq.s32.totalorder %s23, 0
      %p65 = por %p63, %p64
      %p66 = scmp.ne.s32.totalorder %s52, %s53
      %p67 = scmp.eq.s32.totalorder %s24, 1
      %p68 = por %p66, %p67
      %p70 = scmp.ne.s32.totalorder %s53, %s69
      %p71 = scmp.eq.s32.totalorder %s24, 0
      %p72 = por %p70, %p71
      %s74 = sadd.s32 %s73, 1
      %p77 = scmp.eq.s32.totalorder %s18, 1
      %p78 = scmp.ne.s32.totalorder %s73, %s75
      %p79 = scmp.eq.s32.totalorder %s18, 0
      %p80 = por %p78, %p79
      %p81 = scmp.ne.s32.totalorder %s73, %s75
      %p82 = scmp.eq.s32.totalorder %s23, 1
      %p83 = por %p81, %p82
      %p84 = scmp.ne.s32.totalorder %s75, %s76
      %p85 = scmp.eq.s32.totalorder %s23, 0
      %p86 = por %p84, %p85
      %p87 = scmp.ne.s32.totalorder %s75, %s76
      %p88 = scmp.eq.s32.totalorder %s24, 1
      %p89 = por %p87, %p88
      %p91 = scmp.ne.s32.totalorder %s76, %s90
      %p92 = scmp.eq.s32.totalorder %s24, 0
      %p93 = por %p91, %p92
      %s95 = sadd.s32 %s94, 1
      %p98 = scmp.eq.s32.totalorder %s18, 1
      %p99 = scmp.ne.s32.totalorder %s94, %s96
      %p100 = scmp.eq.s32.totalorder %s18, 0
      %p101 = por %p99, %p100
      %p102 = scmp.ne.s32.totalorder %s94, %s96
      %p103 = scmp.eq.s32.totalorder %s23, 1
      %p104 = por %p102, %p103
      %p105 = scmp.ne.s32.totalorder %s96, %s97
      %p106 = scmp.eq.s32.totalorder %s23, 0
      %p107 = por %p105, %p106
      %p108 = scmp.ne.s32.totalorder %s96, %s97
      %p109 = scmp.eq.s32.totalorder %s24, 1
      %p110 = por %p108, %p109
      %p112 = scmp.ne.s32.totalorder %s97, %s111
      %p113 = scmp.eq.s32.totalorder %s24, 0
      %p114 = por %p112, %p113
      %s116 = sadd.s32 %s115, 1
      %p119 = scmp.eq.s32.totalorder %s18, 1
      %p120 = scmp.ne.s32.totalorder %s115, %s117
      %p121 = scmp.eq.s32.totalorder %s18, 0
      %p122 = por %p120, %p121
      %p123 = scmp.ne.s32.totalorder %s115, %s117
      %p124 = scmp.eq.s32.totalorder %s23, 1
      %p125 = por %p123, %p124
      %p126 = scmp.ne.s32.totalorder %s117, %s118
      %p127 = scmp.eq.s32.totalorder %s23, 0
      %p128 = por %p126, %p127
      %p129 = scmp.ne.s32.totalorder %s117, %s118
      %p130 = scmp.eq.s32.totalorder %s24, 1
      %p131 = por %p129, %p130
      %p133 = scmp.ne.s32.totalorder %s118, %s132
      %p134 = scmp.eq.s32.totalorder %s24, 0
      %p135 = por %p133, %p134
      %s136 = ssub.s32 %s18, %s25
      %p137 = scmp.eq.s32.totalorder %s136, 0
      %s139 = sadd.s32 %s138, 1
      %s140 = scalar_select %p137, %s138, %s139
      %p143 = pneg %p137
      %p144 = scmp.eq.s32.totalorder %s18, 1
      %p145 = por %p143, %p144
      %p146 = scmp.ne.s32.totalorder %s138, %s141
      %p147 = scmp.eq.s32.totalorder %s18, 0
      %p148 = por %p146, %p147
      %p149 = scmp.ne.s32.totalorder %s138, %s141
      %p150 = scmp.eq.s32.totalorder %s23, 1
      %p151 = por %p149, %p150
      %p152 = scmp.ne.s32.totalorder %s141, %s142
      %p153 = scmp.eq.s32.totalorder %s23, 0
      %p154 = por %p152, %p153
      %p155 = scmp.ne.s32.totalorder %s141, %s142
      %p156 = scmp.eq.s32.totalorder %s24, 1
      %p157 = por %p155, %p156
      %p159 = scmp.ne.s32.totalorder %s142, %s158
      %p160 = scmp.eq.s32.totalorder %s24, 0
      %p161 = por %p159, %p160
      %s162 = ssub.s32 %s18, %s25
      %p163 = scmp.eq.s32.totalorder %s162, 0
      %s165 = sadd.s32 %s164, 1
      %s166 = scalar_select %p163, %s164, %s165
      %p169 = pneg %p163
      %p170 = scmp.eq.s32.totalorder %s18, 1
      %p171 = por %p169, %p170
      %p172 = scmp.ne.s32.totalorder %s164, %s167
      %p173 = scmp.eq.s32.totalorder %s18, 0
      %p174 = por %p172, %p173
      %p175 = scmp.ne.s32.totalorder %s164, %s167
      %p176 = scmp.eq.s32.totalorder %s23, 1
      %p177 = por %p175, %p176
      %p178 = scmp.ne.s32.totalorder %s167, %s168
      %p179 = scmp.eq.s32.totalorder %s23, 0
      %p180 = por %p178, %p179
      %p181 = scmp.ne.s32.totalorder %s167, %s168
      %p182 = scmp.eq.s32.totalorder %s24, 1
      %p183 = por %p181, %p182
      %p185 = scmp.ne.s32.totalorder %s168, %s184
      %p186 = scmp.eq.s32.totalorder %s24, 0
      %p187 = por %p185, %p186
      %p188 = scmp.le.s32.totalorder 1, %s18
      %p189 = scmp.lt.s32.totalorder %s18, 3
      %p190 = pnand %p188, %p189
      %p191 = pneg %p190
      // Predicated region
      $region9: #{gcn_encoder_graph_forward.6} parent=5 // pred_check
        _
      $region10: #{gcn_encoder_graph_forward.6} parent=5 // pred_check_branch
        %193 = sbr.rel (%p190) target = $region12
      $region11: #{gcn_encoder_graph_forward.6} parent=5 // pred_region
        %s194 = ssub.s32 %s18, 1
        // Predicated region
        $region13: #{gcn_encoder_graph_forward.6} parent=11 // pred_check
          %p195 = pneg %p39
        $region14: #{gcn_encoder_graph_forward.6} parent=11 // pred_check_branch
          %197 = sbr.rel (%p195) target = $region16
        $region15: #{gcn_encoder_graph_forward.6} parent=11 // pred_region
          _
        $region16: #{gcn_encoder_graph_forward.6} parent=11 // pred_fallthru
          _
        // Predicated region
        $region17: #{gcn_encoder_graph_forward.6} parent=11 // pred_check
          %p198 = pneg %p86
        $region18: #{gcn_encoder_graph_forward.6} parent=11 // pred_check_branch
          %200 = sbr.rel (%p198) target = $region20
        $region19: #{gcn_encoder_graph_forward.6} parent=11 // pred_region
          _
        $region20: #{gcn_encoder_graph_forward.6} parent=11 // pred_fallthru
          _
        // Predicated region
        $region21: #{gcn_encoder_graph_forward.6} parent=11 // pred_check
          %p201 = pneg %p107
        $region22: #{gcn_encoder_graph_forward.6} parent=11 // pred_check_branch
          %203 = sbr.rel (%p201) target = $region24
        $region23: #{gcn_encoder_graph_forward.6} parent=11 // pred_region
          _
        $region24: #{gcn_encoder_graph_forward.6} parent=11 // pred_fallthru
          _
        // Predicated region
        $region25: #{gcn_encoder_graph_forward.6} parent=11 // pred_check
          %p204 = pneg %p128
        $region26: #{gcn_encoder_graph_forward.6} parent=11 // pred_check_branch
          %206 = sbr.rel (%p204) target = $region28
        $region27: #{gcn_encoder_graph_forward.6} parent=11 // pred_region
          _
        $region28: #{gcn_encoder_graph_forward.6} parent=11 // pred_fallthru
          _
      $region12: #{gcn_encoder_graph_forward.6} parent=5 // pred_fallthru
        _
      %p207 = scmp.lt.s32.totalorder %s18, 2
      // Predicated region
      $region29: #{gcn_encoder_graph_forward.6} parent=5 // pred_check
        %p208 = pneg %p207
      $region30: #{gcn_encoder_graph_forward.6} parent=5 // pred_check_branch
        %210 = sbr.rel (%p208) target = $region32
      $region31: #{gcn_encoder_graph_forward.6} parent=5 // pred_region
        // Predicated region
        $region33: #{gcn_encoder_graph_forward.6} parent=31 // pred_check
          %p211 = pneg %p59
        $region34: #{gcn_encoder_graph_forward.6} parent=31 // pred_check_branch
          %213 = sbr.rel (%p211) target = $region36
        $region35: #{gcn_encoder_graph_forward.6} parent=31 // pred_region
          %s214 = sand.u32 %s49, 1
          %s215 = sand.u32 %s49, 1
          %s216 = smul.addr %s215, 8
          %s217 = scalar_lea.vmem [#allocation3], %s216
          %s218 = smul.addr %s18, 4
          %s219 = scalar_lea.vmem %s1, %s218
          // Predicated region
          $region37: #{gcn_encoder_graph_forward.6} parent=35 // pred_check
            _
          $region38: #{gcn_encoder_graph_forward.6} parent=35 // pred_check_branch
            %221 = sbr.rel (0) target = $region40
          $region39: #{gcn_encoder_graph_forward.6} parent=35 // pred_region
            // Predicated region
            $region41: #{gcn_encoder_graph_forward.6} parent=39 // pred_check
              _
            $region42: #{gcn_encoder_graph_forward.6} parent=39 // pred_check_branch
              %223 = sbr.rel target = $region44
            $region43: #{gcn_encoder_graph_forward.6} parent=39 // pred_region
              // Predicated region
              $region56: #{gcn_encoder_graph_forward.6} parent=43 // pred_check
                _
              $region57: #{gcn_encoder_graph_forward.6} parent=43 // pred_check_branch
                %240 = sbr.rel (0) target = $region59
              $region58: #{gcn_encoder_graph_forward.6} parent=43 // pred_region
                loop: start=0, step=1, limit=1
                $region60: #{gcn_encoder_graph_forward.6} parent=58 // loop_pre_header
                  _
                $region61: #{gcn_encoder_graph_forward.6} parent=58 // loop_header
                  %s242 = sphi 0, %s246
                  %p243 = scmp.ge.s32.totalorder %s242, 1
                  %s247 = sphi %s219, %s219
                  %s248 = sphi %s217, %s217
                $region62: #{gcn_encoder_graph_forward.6} parent=58 // loop_header_branch
                  %245 = sbr.rel (%p243) target = $region66
                $region63: #{gcn_encoder_graph_forward.6} parent=58 // loop_body
                  _
                $region64: #{gcn_encoder_graph_forward.6} parent=58 // loop_footer
                  %s246 = sadd.s32 1, %s242
                $region65: #{gcn_encoder_graph_forward.6} parent=58 // loop_footer_branch
                  %241 = sbr.rel target = $region61
                $region66: #{gcn_encoder_graph_forward.6} parent=58 // loop_exit
                  _
                loop: start=0, step=1, limit=1
                $region67: #{gcn_encoder_graph_forward.6} parent=58 // loop_pre_header
                  _
                $region68: #{gcn_encoder_graph_forward.6} parent=58 // loop_header
                  %s251 = sphi 0, %s255
                  %p252 = scmp.ge.s32.totalorder %s251, 1
                  %s256 = sphi %s219, %s219
                  %s257 = sphi %s217, %s217
                $region69: #{gcn_encoder_graph_forward.6} parent=58 // loop_header_branch
                  %254 = sbr.rel (%p252) target = $region73
                $region70: #{gcn_encoder_graph_forward.6} parent=58 // loop_body
                  %v258 = vld [vmem:[%s256] sm:$0xf]
                  %259 = vst [vmem:[%s257] sm:$0xf] %v258
                  %v260 = vld [vmem:[%s256 + $0x8] sm:$0xf]
                  %261 = vst [vmem:[%s257 + $0x4] sm:$0xf] %v260
                $region71: #{gcn_encoder_graph_forward.6} parent=58 // loop_footer
                  %s255 = sadd.s32 1, %s251
                $region72: #{gcn_encoder_graph_forward.6} parent=58 // loop_footer_branch
                  %250 = sbr.rel target = $region68
                $region73: #{gcn_encoder_graph_forward.6} parent=58 // loop_exit
                  _
              $region59: #{gcn_encoder_graph_forward.6} parent=43 // pred_fallthru
                _
            $region44: #{gcn_encoder_graph_forward.6} parent=39 // pred_fallthru
              _
            // Predicated region
            $region45: #{gcn_encoder_graph_forward.6} parent=39 // pred_check
              _
            $region46: #{gcn_encoder_graph_forward.6} parent=39 // pred_check_branch
              %225 = sbr.rel (0) target = $region48
            $region47: #{gcn_encoder_graph_forward.6} parent=39 // pred_region
              loop: start=0, step=1, limit=1
              $region49: #{gcn_encoder_graph_forward.6} parent=47 // loop_pre_header
                _
              $region50: #{gcn_encoder_graph_forward.6} parent=47 // loop_header
                %s228 = sphi 0, %s232
                %p229 = scmp.ge.s32.totalorder %s228, 1
                %s233 = sphi %s219, %s219
                %s234 = sphi %s217, %s217
              $region51: #{gcn_encoder_graph_forward.6} parent=47 // loop_header_branch
                %231 = sbr.rel (%p229) target = $region55
              $region52: #{gcn_encoder_graph_forward.6} parent=47 // loop_body
                %v235 = vld [vmem:[%s233] sm:$0xf]
                %236 = vst [vmem:[%s234] sm:$0xf] %v235
                %v237 = vld [vmem:[%s233 + $0x8] sm:$0xf]
                %238 = vst [vmem:[%s234 + $0x4] sm:$0xf] %v237
              $region53: #{gcn_encoder_graph_forward.6} parent=47 // loop_footer
                %s232 = sadd.s32 1, %s228
              $region54: #{gcn_encoder_graph_forward.6} parent=47 // loop_footer_branch
                %227 = sbr.rel target = $region50
              $region55: #{gcn_encoder_graph_forward.6} parent=47 // loop_exit
                _
            $region48: #{gcn_encoder_graph_forward.6} parent=39 // pred_fallthru
              _
          $region40: #{gcn_encoder_graph_forward.6} parent=35 // pred_fallthru
            _
          %262 = vnop
        $region36: #{gcn_encoder_graph_forward.6} parent=31 // pred_fallthru
          _
      $region32: #{gcn_encoder_graph_forward.6} parent=5 // pred_fallthru
        _
      %p263 = scmp.le.s32.totalorder 1, %s18
      %p264 = scmp.lt.s32.totalorder %s18, 3
      %p265 = pnand %p263, %p264
      %p266 = pneg %p265
      // Predicated region
      $region74: #{gcn_encoder_graph_forward.6} parent=5 // pred_check
        _
      $region75: #{gcn_encoder_graph_forward.6} parent=5 // pred_check_branch
        %268 = sbr.rel (%p265) target = $region77
      $region76: #{gcn_encoder_graph_forward.6} parent=5 // pred_region
        %s269 = ssub.s32 %s18, 1
        %s270 = sand.u32 %s52, 1
        %s271 = sand.u32 %s52, 1
        %s272 = smul.addr %s271, 8
        %s273 = scalar_lea.vmem [#allocation3], %s272
        // Predicated region
        $region78: #{gcn_encoder_graph_forward.6} parent=76 // pred_check
          %p274 = pneg %p65
        $region79: #{gcn_encoder_graph_forward.6} parent=76 // pred_check_branch
          %276 = sbr.rel (%p274) target = $region81
        $region80: #{gcn_encoder_graph_forward.6} parent=76 // pred_region
          _
        $region81: #{gcn_encoder_graph_forward.6} parent=76 // pred_fallthru
          _
        %p277 = pneg %p39
        %p278 = pneg %p36
        %s279 = sand.u32 %s52, 1
        %s280 = sand.u32 %s52, 1
        %s281 = smul.addr %s280, 8
        %s282 = scalar_lea.vmem [#allocation3], %s281
        %p283 = pneg %p65
        %p284 = pneg %p62
        %p285 = pneg %p86
        %p286 = pneg %p83
        %p287 = pneg %p107
        %p288 = pneg %p104
        %p289 = pneg %p128
        %p290 = pneg %p125
        %p291 = pneg %p154
        %p292 = pneg %p151
        %s293 = sand.u32 %s141, 1
        %s294 = scalar_lea.sflag [#allocation5], %s293
        %s295 = sand.u32 %s141, 1
        %s296 = smul.addr %s295, 16
        %s297 = scalar_lea.vmem [#allocation4], %s296
        %p298 = pneg %p180
        %p299 = pneg %p177
        %p300 = scmp.lt.s32.totalorder %s23, 1
        %s301 = scalar_select %p300, %s23, 1
        %s302 = smul.addr %s301, 2
        %s303 = scalar_lea.vmem %s6, %s302
        %p304 = scmp.lt.s32.totalorder %s23, 1
        %s305 = scalar_select %p304, %s23, 1
        %s306 = smul.addr %s305, 2
        %s307 = scalar_lea.vmem %s6, %s306
        %v309 = vld [vmem:[%s273] sm:$0xf]
        %v310 = vld [vmem:[%s273 + $0x4] sm:$0xf]
        %v311 = vld [vmem:[%s0] sm:$0xff]
        %v312 = vld [vmem:[%s0 + $0x8] sm:$0xff]
        %v313 = vld [vmem:[%s0 + $0x10] sm:$0xff]
        %v314 = vld [vmem:[%s0 + $0x18] sm:$0xff]
        %v315 = vpack.c.bf16 %v312, %v311
        %v316 = vpack.c.bf16 %v314, %v313
        %vm317 = vcmask 130048
        %v319 = vsel %vm317, %v309, 0
        %321 = vmatprep.subr.bf16.mxu0 0
        %322 = vmatpush1.bf16.msra.mxu0 %v315
        %323 = vmatprep.subr.bf16.mxu0 0
        %324 = vmatpush1.bf16.msra.mxu0 0
        %325 = vmatprep.subr.bf16.mxu0 0
        %326 = vmatpush1.bf16.msra.mxu0 0
        %327 = vmatprep.subr.bf16.mxu0 0
        %328 = vmatpush1.bf16.msra.mxu0 0
        %329 = vmatprep.subr.bf16.mxu0 0
        %330 = vmatpush1.bf16.msra.mxu0 0
        %331 = vmatprep.subr.bf16.mxu0 0
        %332 = vmatpush1.bf16.msra.mxu0 0
        %333 = vmatprep.subr.bf16.mxu0 0
        %334 = vmatpush1.bf16.msra.mxu0 0
        %335 = vmatprep.subr.bf16.mxu0 0
        %336 = vmatpush1.bf16.msra.mxu0 0
        %337 = vmatprep.subr.bf16.mxu0 0
        %338 = vmatpush1.bf16.msra.mxu0 0
        %339 = vmatprep.subr.bf16.mxu0 0
        %340 = vmatpush1.bf16.msra.mxu0 0
        %341 = vmatprep.subr.bf16.mxu0 0
        %342 = vmatpush1.bf16.msra.mxu0 0
        %343 = vmatprep.subr.bf16.mxu0 0
        %344 = vmatpush1.bf16.msra.mxu0 0
        %345 = vmatprep.subr.bf16.mxu0 0
        %346 = vmatpush1.bf16.msra.mxu0 0
        %347 = vmatprep.subr.bf16.mxu0 0
        %348 = vmatpush1.bf16.msra.mxu0 0
        %349 = vmatprep.subr.bf16.mxu0 0
        %350 = vmatpush1.bf16.msra.mxu0 0
        %351 = vmatprep.subr.bf16.mxu0 0
        %352 = vmatpush1.bf16.msra.mxu0 0
        %353 = vmatprep.mubr.bf16.mxu0 0
        %354 = vmatmul.mubr.bf16.gmra.mrb[0].mxu0 %v319
        %v355 = vpop.f32.mrb[0].mxu0
        %v356 = vadd.f32 0.0, %v355
        %v357 = vpop.f32.mrb[0].mxu0
        %v358 = vpop.f32.mrb[0].mxu0
        %v359 = vpop.f32.mrb[0].mxu0
        %360 = vdwg.mxu0
        %v362 = vsel %vm317, %v310, 0
        %364 = vmatprep.subr.bf16.mxu0 0
        %365 = vmatpush1.bf16.msra.mxu0 %v316
        %366 = vmatprep.subr.bf16.mxu0 0
        %367 = vmatpush1.bf16.msra.mxu0 0
        %368 = vmatprep.subr.bf16.mxu0 0
        %369 = vmatpush1.bf16.msra.mxu0 0
        %370 = vmatprep.subr.bf16.mxu0 0
        %371 = vmatpush1.bf16.msra.mxu0 0
        %372 = vmatprep.subr.bf16.mxu0 0
        %373 = vmatpush1.bf16.msra.mxu0 0
        %374 = vmatprep.subr.bf16.mxu0 0
        %375 = vmatpush1.bf16.msra.mxu0 0
        %376 = vmatprep.subr.bf16.mxu0 0
        %377 = vmatpush1.bf16.msra.mxu0 0
        %378 = vmatprep.subr.bf16.mxu0 0
        %379 = vmatpush1.bf16.msra.mxu0 0
        %380 = vmatprep.subr.bf16.mxu0 0
        %381 = vmatpush1.bf16.msra.mxu0 0
        %382 = vmatprep.subr.bf16.mxu0 0
        %383 = vmatpush1.bf16.msra.mxu0 0
        %384 = vmatprep.subr.bf16.mxu0 0
        %385 = vmatpush1.bf16.msra.mxu0 0
        %386 = vmatprep.subr.bf16.mxu0 0
        %387 = vmatpush1.bf16.msra.mxu0 0
        %388 = vmatprep.subr.bf16.mxu0 0
        %389 = vmatpush1.bf16.msra.mxu0 0
        %390 = vmatprep.subr.bf16.mxu0 0
        %391 = vmatpush1.bf16.msra.mxu0 0
        %392 = vmatprep.subr.bf16.mxu0 0
        %393 = vmatpush1.bf16.msra.mxu0 0
        %394 = vmatprep.subr.bf16.mxu0 0
        %395 = vmatpush1.bf16.msra.mxu0 0
        %396 = vmatprep.mubr.bf16.mxu0 0
        %397 = vmatmul.mubr.bf16.gmra.mrb[0].mxu0 %v362
        %v398 = vpop.f32.mrb[0].mxu0
        %v399 = vadd.f32 0.0, %v398
        %v400 = vpop.f32.mrb[0].mxu0
        %v401 = vpop.f32.mrb[0].mxu0
        %v402 = vpop.f32.mrb[0].mxu0
        %403 = vdwg.mxu0
        %v404 = vpack.c.bf16 %v399, %v356
        %v405 = vld [vmem:[%s2] sm:$0xf]
        %v406 = vld [vmem:[%s2 + $0x4] sm:$0xf]
        %v407 = vld [vmem:[%s2 + $0x8] sm:$0xf]
        %v408 = vld [vmem:[%s2 + $0xc] sm:$0xf]
        %v413 = vunpack.c.l.b16 %v405
        %v414 = vunpack.c.l.b16 %v406
        %v415 = vunpack.c.l.b16 %v407
        %v416 = vunpack.c.l.b16 %v408
        %v417 = vpack.c.b16 %v414, %v413
        %v418 = vpack.c.b16 %v416, %v415
        %vm421 = vcmask 261120
        %v423 = vsel %vm421, %v404, 0
        %425 = vmatprep.subr.bf16.mxu0 0
        %426 = vmatpush1.bf16.msra.mxu0 %v417
        %427 = vmatprep.subr.bf16.mxu0 0
        %428 = vmatpush1.bf16.msra.mxu0 %v418
        %429 = vmatprep.subr.bf16.mxu0 0
        %430 = vmatpush1.bf16.msra.mxu0 0
        %431 = vmatprep.subr.bf16.mxu0 0
        %432 = vmatpush1.bf16.msra.mxu0 0
        %433 = vmatprep.subr.bf16.mxu0 0
        %434 = vmatpush1.bf16.msra.mxu0 0
        %435 = vmatprep.subr.bf16.mxu0 0
        %436 = vmatpush1.bf16.msra.mxu0 0
        %437 = vmatprep.subr.bf16.mxu0 0
        %438 = vmatpush1.bf16.msra.mxu0 0
        %439 = vmatprep.subr.bf16.mxu0 0
        %440 = vmatpush1.bf16.msra.mxu0 0
        %441 = vmatprep.subr.bf16.mxu0 0
        %442 = vmatpush1.bf16.msra.mxu0 0
        %443 = vmatprep.subr.bf16.mxu0 0
        %444 = vmatpush1.bf16.msra.mxu0 0
        %445 = vmatprep.subr.bf16.mxu0 0
        %446 = vmatpush1.bf16.msra.mxu0 0
        %447 = vmatprep.subr.bf16.mxu0 0
        %448 = vmatpush1.bf16.msra.mxu0 0
        %449 = vmatprep.subr.bf16.mxu0 0
        %450 = vmatpush1.bf16.msra.mxu0 0
        %451 = vmatprep.subr.bf16.mxu0 0
        %452 = vmatpush1.bf16.msra.mxu0 0
        %453 = vmatprep.subr.bf16.mxu0 0
        %454 = vmatpush1.bf16.msra.mxu0 0
        %455 = vmatprep.subr.bf16.mxu0 0
        %456 = vmatpush1.bf16.msra.mxu0 0
        %457 = vmatprep.mubr.bf16.mxu0 0
        %458 = vmatmul.mubr.bf16.gmra.mrb[0].mxu0 %v423
        %v459 = vpop.f32.mrb[0].mxu0
        %v460 = vadd.f32 0.0, %v459
        %v461 = vpop.f32.mrb[0].mxu0
        %v462 = vpop.f32.mrb[0].mxu0
        %v463 = vadd.f32 0.0, %v462
        %v464 = vpop.f32.mrb[0].mxu0
        %465 = vdwg.mxu0
        %v466 = vld [vmem:[%s3] sm:$0x1]
        %v468 = vlaneseq
        %v469 = vshrl.u32 %v468, 7
        %v470 = vsub.s32 0, %v469
        %v471 = vrot.slane %v466, %v470
        %v473 = vadd.f32 %v460, %v471
        %v474 = vadd.f32 %v463, %v471
        %v475 = vld [vmem:[#allocation2] sm:$0x1]
        %s476 = vtos %v475
        %vm477 = vcmp.ge.f32.partialorder %v473, 0.0
        %vm478 = vcmp.ge.f32.partialorder %v474, 0.0
        %v479 = vstv %s476
        %v480 = vmul.f32 %v479, %v473
        %v481 = vmul.f32 %v479, %v474
        %v482 = vsel %vm477, %v473, %v480
        %v483 = vsel %vm478, %v474, %v481
        %484 = vst.msk [vmem:[%s297] sm:$0xff] %vm317, %v482
        %485 = vst.msk [vmem:[%s297 + $0x8] sm:$0xff] %vm317, %v483
        %v486 = vsel %vm317, %v482, -inf
        %v487 = vrot.slane %v486, 4
        %v488 = vmax.f32 %v486, %v487
        %v489 = vrot.slane %v488, 2
        %v490 = vmax.f32 %v488, %v489
        %v491 = vrot.slane %v490, 1
        %v492 = vmax.f32 %v490, %v491
        %v493 = vsel %vm317, %v483, -inf
        %v494 = vrot.slane %v493, 4
        %v495 = vmax.f32 %v493, %v494
        %v496 = vrot.slane %v495, 2
        %v497 = vmax.f32 %v495, %v496
        %v498 = vrot.slane %v497, 1
        %v499 = vmax.f32 %v497, %v498
        %vm502 = vcmask 1041409
        %v503 = vsel %vm502, %v499, %v492
        %vm505 = vcmask 123904
        %506 = vst.msk [vmem:[%s307] sm:$0x3] %vm505, %v503
        %s507 = sand.u32 %s141, 1
        %s508 = scalar_lea.sflag [#allocation5], %s507
        %s509 = sand.u32 %s141, 1
        %s510 = smul.addr %s509, 16
        %s511 = scalar_lea.vmem [#allocation4], %s510
        %p512 = scmp.lt.s32.totalorder %s23, 1
        %s513 = scalar_select %p512, %s23, 1
        %s514 = smul.addr %s513, 2
        %s515 = scalar_lea.vmem %s6, %s514
        // Predicated region
        $region82: #{gcn_encoder_graph_forward.6} parent=76 // pred_check
          %p516 = pneg %p151
        $region83: #{gcn_encoder_graph_forward.6} parent=76 // pred_check_branch
          %518 = sbr.rel (%p516) target = $region85
        $region84: #{gcn_encoder_graph_forward.6} parent=76 // pred_region
          %s520 = ssub.s32 256, 256
          %521 = vsyncadd %s508, %s520
          %s522 = smul.addr %s23, 128
          %s523 = scalar_lea.hbm %s5, %s522
          %s524 = sshll.u32 %s511, 4
          %s525 = int_to_ptr.vmem [resolvable:$true] %s524
          %530 = dma.vmem_to_hbm [thread:$0]  %s525, 256, %s523, %s508, 128, 256, 8
        $region85: #{gcn_encoder_graph_forward.6} parent=76 // pred_fallthru
          _
        // Predicated region
        $region86: #{gcn_encoder_graph_forward.6} parent=76 // pred_check
          %p531 = pneg %p177
        $region87: #{gcn_encoder_graph_forward.6} parent=76 // pred_check_branch
          %533 = sbr.rel (%p531) target = $region89
        $region88: #{gcn_encoder_graph_forward.6} parent=76 // pred_region
          _
        $region89: #{gcn_encoder_graph_forward.6} parent=76 // pred_fallthru
          _
      $region77: #{gcn_encoder_graph_forward.6} parent=5 // pred_fallthru
        _
      %p534 = scmp.le.s32.totalorder 2, %s18
      // Predicated region
      $region90: #{gcn_encoder_graph_forward.6} parent=5 // pred_check
        %p535 = pneg %p534
      $region91: #{gcn_encoder_graph_forward.6} parent=5 // pred_check_branch
        %537 = sbr.rel (%p535) target = $region93
      $region92: #{gcn_encoder_graph_forward.6} parent=5 // pred_region
        %s538 = ssub.s32 %s18, 2
        // Predicated region
        $region94: #{gcn_encoder_graph_forward.6} parent=92 // pred_check
          %p539 = pneg %p157
        $region95: #{gcn_encoder_graph_forward.6} parent=92 // pred_check_branch
          %541 = sbr.rel (%p539) target = $region97
        $region96: #{gcn_encoder_graph_forward.6} parent=92 // pred_region
          %s542 = sand.u32 %s142, 1
          %s543 = scalar_lea.sflag [#allocation5], %s542
          %s544 = sand.u32 %s142, 1
          %s545 = smul.addr %s544, 16
          %s546 = scalar_lea.vmem [#allocation4], %s545
          %547 = dma.done %s543, 256
        $region97: #{gcn_encoder_graph_forward.6} parent=92 // pred_fallthru
          _
        // Predicated region
        $region98: #{gcn_encoder_graph_forward.6} parent=92 // pred_check
          %p548 = pneg %p183
        $region99: #{gcn_encoder_graph_forward.6} parent=92 // pred_check_branch
          %550 = sbr.rel (%p548) target = $region101
        $region100: #{gcn_encoder_graph_forward.6} parent=92 // pred_region
          %p551 = scmp.lt.s32.totalorder %s24, 1
          %s552 = scalar_select %p551, %s24, 1
          %s553 = smul.addr %s552, 2
          %s554 = scalar_lea.vmem %s6, %s553
        $region101: #{gcn_encoder_graph_forward.6} parent=92 // pred_fallthru
          _
      $region93: #{gcn_encoder_graph_forward.6} parent=5 // pred_fallthru
        _
    $region6: #{gcn_encoder_graph_forward.6} parent=1 // loop_footer
      %s22 = sadd.s32 1, %s18
    $region7: #{gcn_encoder_graph_forward.6} parent=1 // loop_footer_branch
      %17 = sbr.rel target = $region3
    $region8: #{gcn_encoder_graph_forward.6} parent=1 // loop_exit
      _
    %555 = vsyncpa [#allocation5], 1
    %s556 = scalar_lea.sflag [#allocation5], 1
    %557 = vsyncpa %s556, 1

// kernel: gcn_encoder_graph_forward.5
$region0: #{gcn_encoder_graph_forward.5}
  #allocation0 [shape = 'u32[]', space=smem, size = 0x4, offset = 0x4, fixed_abs, tag = 'smem constant byte address 0x4 - core index']
  #allocation1 [shape = 'u32[144,128]{1,0:T(1,128)}', space=vmem, size = 0x12000, scoped, tag = 'internal scratch']
  #allocation2 [shape = 'f32[1,1]{1,0:T(1,128)S(1)}', space=vmem, size = 0x200, scoped, tag = 'scoped memory for gcn_encoder_graph_forward.5']
  %s0 = inlined_call_operand.vmem [shape: f32[2,16,32], index: 0, kind: input, shape index: {}]
  %s1 = inlined_call_operand.vmem [shape: bf16[2,16,16], index: 1, kind: input, shape index: {}]
  %s2 = inlined_call_operand.vmem [shape: bf16[32,32], index: 2, kind: input, shape index: {}]
  %s3 = inlined_call_operand.vmem [shape: f32[1,32], index: 3, kind: input, shape index: {}]
  %s4 = inlined_call_operand.<no memory space> [shape: f32[1,1], index: 4, kind: input, shape index: {}]
  %s5 = inlined_call_operand.vmem [shape: f32[2,16,32], index: 5, kind: output, shape index: {0}]
  %s6 = inlined_call_operand.vmem [shape: f32[2,2,32], index: 6, kind: output, shape index: {1}]
  %7 = xla_tuple %s5, %s6
  %s8 = sld [smem:[#allocation0]]
  $region136: #{gcn_encoder_graph_forward.5} parent=0
    _
  %s10 = ssub.s32 1, %s8
  %s11 = scalar_select 0, %s10, %s8
  %v12 = vstv %s4
  %13 = vst [vmem:[#allocation2] sm:$0x1] %v12
  $region1: #{gcn_encoder_graph_forward.5} parent=0
    #allocation3 [shape = 'u8[8192]{0}', space=vmem, size = 0x2000, scoped, tag = 'input window, operand 1']
    #allocation4 [shape = 'u8[16384]{0}', space=vmem, size = 0x4000, scoped, tag = 'output window, operand 0']
    loop: start=0, step=1, limit=4
    $region2: #{gcn_encoder_graph_forward.5} parent=1 // loop_pre_header
      _
    $region3: #{gcn_encoder_graph_forward.5} parent=1 // loop_header
      %s15 = sphi 0, %s19
      %p16 = scmp.ge.s32.totalorder %s15, 4
      %s23 = sphi 0, %s23
      %s25 = sphi 0, %s23
      %s26 = sphi 0, %s25
      %s40 = sphi 0, %s26
      %s46 = sphi 0, %s48
      %s49 = sphi 0, %s46
      %s50 = sphi 0, %s49
      %s66 = sphi 0, %s50
      %s70 = sphi 0, %s70
      %s72 = sphi 0, %s70
      %s73 = sphi 0, %s72
      %s87 = sphi 0, %s73
      %s91 = sphi 0, %s91
      %s93 = sphi 0, %s91
      %s94 = sphi 0, %s93
      %s108 = sphi 0, %s94
      %s112 = sphi 0, %s112
      %s114 = sphi 0, %s112
      %s115 = sphi 0, %s114
      %s129 = sphi 0, %s115
      %s135 = sphi 0, %s137
      %s138 = sphi 0, %s135
      %s139 = sphi 0, %s138
      %s155 = sphi 0, %s139
      %s161 = sphi 0, %s163
      %s164 = sphi 0, %s161
      %s165 = sphi 0, %s164
      %s181 = sphi 0, %s165
    $region4: #{gcn_encoder_graph_forward.5} parent=1 // loop_header_branch
      %18 = sbr.rel (%p16) target = $region8
    $region5: #{gcn_encoder_graph_forward.5} parent=1 // loop_body
      %s20 = ssub.s32 %s15, 1
      %s21 = ssub.s32 %s15, 2
      %s22 = sadd.s32 %s15, 1
      %s24 = sadd.s32 %s23, 1
      %p27 = scmp.eq.s32.totalorder %s15, 1
      %p28 = scmp.ne.s32.totalorder %s23, %s25
      %p29 = scmp.eq.s32.totalorder %s15, 0
      %p30 = por %p28, %p29
      %p31 = scmp.ne.s32.totalorder %s23, %s25
      %p32 = scmp.eq.s32.totalorder %s20, 1
      %p33 = por %p31, %p32
      %p34 = scmp.ne.s32.totalorder %s25, %s26
      %p35 = scmp.eq.s32.totalorder %s20, 0
      %p36 = por %p34, %p35
      %p37 = scmp.ne.s32.totalorder %s25, %s26
      %p38 = scmp.eq.s32.totalorder %s21, 1
      %p39 = por %p37, %p38
      %p41 = scmp.ne.s32.totalorder %s26, %s40
      %p42 = scmp.eq.s32.totalorder %s21, 0
      %p43 = por %p41, %p42
      %s44 = ssub.s32 %s15, %s22
      %p45 = scmp.eq.s32.totalorder %s44, 0
      %s47 = sadd.s32 %s46, 1
      %s48 = scalar_select %p45, %s46, %s47
      %p51 = pneg %p45
      %p52 = scmp.eq.s32.totalorder %s15, 1
      %p53 = por %p51, %p52
      %p54 = scmp.ne.s32.totalorder %s46, %s49
      %p55 = scmp.eq.s32.totalorder %s15, 0
      %p56 = por %p54, %p55
      %p57 = scmp.ne.s32.totalorder %s46, %s49
      %p58 = scmp.eq.s32.totalorder %s20, 1
      %p59 = por %p57, %p58
      %p60 = scmp.ne.s32.totalorder %s49, %s50
      %p61 = scmp.eq.s32.totalorder %s20, 0
      %p62 = por %p60, %p61
      %p63 = scmp.ne.s32.totalorder %s49, %s50
      %p64 = scmp.eq.s32.totalorder %s21, 1
      %p65 = por %p63, %p64
      %p67 = scmp.ne.s32.totalorder %s50, %s66
      %p68 = scmp.eq.s32.totalorder %s21, 0
      %p69 = por %p67, %p68
      %s71 = sadd.s32 %s70, 1
      %p74 = scmp.eq.s32.totalorder %s15, 1
      %p75 = scmp.ne.s32.totalorder %s70, %s72
      %p76 = scmp.eq.s32.totalorder %s15, 0
      %p77 = por %p75, %p76
      %p78 = scmp.ne.s32.totalorder %s70, %s72
      %p79 = scmp.eq.s32.totalorder %s20, 1
      %p80 = por %p78, %p79
      %p81 = scmp.ne.s32.totalorder %s72, %s73
      %p82 = scmp.eq.s32.totalorder %s20, 0
      %p83 = por %p81, %p82
      %p84 = scmp.ne.s32.totalorder %s72, %s73
      %p85 = scmp.eq.s32.totalorder %s21, 1
      %p86 = por %p84, %p85
      %p88 = scmp.ne.s32.totalorder %s73, %s87
      %p89 = scmp.eq.s32.totalorder %s21, 0
      %p90 = por %p88, %p89
      %s92 = sadd.s32 %s91, 1
      %p95 = scmp.eq.s32.totalorder %s15, 1
      %p96 = scmp.ne.s32.totalorder %s91, %s93
      %p97 = scmp.eq.s32.totalorder %s15, 0
      %p98 = por %p96, %p97
      %p99 = scmp.ne.s32.totalorder %s91, %s93
      %p100 = scmp.eq.s32.totalorder %s20, 1
      %p101 = por %p99, %p100
      %p102 = scmp.ne.s32.totalorder %s93, %s94
      %p103 = scmp.eq.s32.totalorder %s20, 0
      %p104 = por %p102, %p103
      %p105 = scmp.ne.s32.totalorder %s93, %s94
      %p106 = scmp.eq.s32.totalorder %s21, 1
      %p107 = por %p105, %p106
      %p109 = scmp.ne.s32.totalorder %s94, %s108
      %p110 = scmp.eq.s32.totalorder %s21, 0
      %p111 = por %p109, %p110
      %s113 = sadd.s32 %s112, 1
      %p116 = scmp.eq.s32.totalorder %s15, 1
      %p117 = scmp.ne.s32.totalorder %s112, %s114
      %p118 = scmp.eq.s32.totalorder %s15, 0
      %p119 = por %p117, %p118
      %p120 = scmp.ne.s32.totalorder %s112, %s114
      %p121 = scmp.eq.s32.totalorder %s20, 1
      %p122 = por %p120, %p121
      %p123 = scmp.ne.s32.totalorder %s114, %s115
      %p124 = scmp.eq.s32.totalorder %s20, 0
      %p125 = por %p123, %p124
      %p126 = scmp.ne.s32.totalorder %s114, %s115
      %p127 = scmp.eq.s32.totalorder %s21, 1
      %p128 = por %p126, %p127
      %p130 = scmp.ne.s32.totalorder %s115, %s129
      %p131 = scmp.eq.s32.totalorder %s21, 0
      %p132 = por %p130, %p131
      %s133 = ssub.s32 %s15, %s22
      %p134 = scmp.eq.s32.totalorder %s133, 0
      %s136 = sadd.s32 %s135, 1
      %s137 = scalar_select %p134, %s135, %s136
      %p140 = pneg %p134
      %p141 = scmp.eq.s32.totalorder %s15, 1
      %p142 = por %p140, %p141
      %p143 = scmp.ne.s32.totalorder %s135, %s138
      %p144 = scmp.eq.s32.totalorder %s15, 0
      %p145 = por %p143, %p144
      %p146 = scmp.ne.s32.totalorder %s135, %s138
      %p147 = scmp.eq.s32.totalorder %s20, 1
      %p148 = por %p146, %p147
      %p149 = scmp.ne.s32.totalorder %s138, %s139
      %p150 = scmp.eq.s32.totalorder %s20, 0
      %p151 = por %p149, %p150
      %p152 = scmp.ne.s32.totalorder %s138, %s139
      %p153 = scmp.eq.s32.totalorder %s21, 1
      %p154 = por %p152, %p153
      %p156 = scmp.ne.s32.totalorder %s139, %s155
      %p157 = scmp.eq.s32.totalorder %s21, 0
      %p158 = por %p156, %p157
      %s159 = ssub.s32 %s15, %s22
      %p160 = scmp.eq.s32.totalorder %s159, 0
      %s162 = sadd.s32 %s161, 1
      %s163 = scalar_select %p160, %s161, %s162
      %p166 = pneg %p160
      %p167 = scmp.eq.s32.totalorder %s15, 1
      %p168 = por %p166, %p167
      %p169 = scmp.ne.s32.totalorder %s161, %s164
      %p170 = scmp.eq.s32.totalorder %s15, 0
      %p171 = por %p169, %p170
      %p172 = scmp.ne.s32.totalorder %s161, %s164
      %p173 = scmp.eq.s32.totalorder %s20, 1
      %p174 = por %p172, %p173
      %p175 = scmp.ne.s32.totalorder %s164, %s165
      %p176 = scmp.eq.s32.totalorder %s20, 0
      %p177 = por %p175, %p176
      %p178 = scmp.ne.s32.totalorder %s164, %s165
      %p179 = scmp.eq.s32.totalorder %s21, 1
      %p180 = por %p178, %p179
      %p182 = scmp.ne.s32.totalorder %s165, %s181
      %p183 = scmp.eq.s32.totalorder %s21, 0
      %p184 = por %p182, %p183
      %p185 = scmp.le.s32.totalorder 1, %s15
      %p186 = scmp.lt.s32.totalorder %s15, 3
      %p187 = pnand %p185, %p186
      %p188 = pneg %p187
      // Predicated region
      $region9: #{gcn_encoder_graph_forward.5} parent=5 // pred_check
        _
      $region10: #{gcn_encoder_graph_forward.5} parent=5 // pred_check_branch
        %190 = sbr.rel (%p187) target = $region12
      $region11: #{gcn_encoder_graph_forward.5} parent=5 // pred_region
        %s191 = ssub.s32 %s15, 1
        // Predicated region
        $region13: #{gcn_encoder_graph_forward.5} parent=11 // pred_check
          %p192 = pneg %p36
        $region14: #{gcn_encoder_graph_forward.5} parent=11 // pred_check_branch
          %194 = sbr.rel (%p192) target = $region16
        $region15: #{gcn_encoder_graph_forward.5} parent=11 // pred_region
          _
        $region16: #{gcn_encoder_graph_forward.5} parent=11 // pred_fallthru
          _
        // Predicated region
        $region17: #{gcn_encoder_graph_forward.5} parent=11 // pred_check
          %p195 = pneg %p83
        $region18: #{gcn_encoder_graph_forward.5} parent=11 // pred_check_branch
          %197 = sbr.rel (%p195) target = $region20
        $region19: #{gcn_encoder_graph_forward.5} parent=11 // pred_region
          _
        $region20: #{gcn_encoder_graph_forward.5} parent=11 // pred_fallthru
          _
        // Predicated region
        $region21: #{gcn_encoder_graph_forward.5} parent=11 // pred_check
          %p198 = pneg %p104
        $region22: #{gcn_encoder_graph_forward.5} parent=11 // pred_check_branch
          %200 = sbr.rel (%p198) target = $region24
        $region23: #{gcn_encoder_graph_forward.5} parent=11 // pred_region
          _
        $region24: #{gcn_encoder_graph_forward.5} parent=11 // pred_fallthru
          _
        // Predicated region
        $region25: #{gcn_encoder_graph_forward.5} parent=11 // pred_check
          %p201 = pneg %p125
        $region26: #{gcn_encoder_graph_forward.5} parent=11 // pred_check_branch
          %203 = sbr.rel (%p201) target = $region28
        $region27: #{gcn_encoder_graph_forward.5} parent=11 // pred_region
          _
        $region28: #{gcn_encoder_graph_forward.5} parent=11 // pred_fallthru
          _
      $region12: #{gcn_encoder_graph_forward.5} parent=5 // pred_fallthru
        _
      %p204 = scmp.lt.s32.totalorder %s15, 2
      // Predicated region
      $region29: #{gcn_encoder_graph_forward.5} parent=5 // pred_check
        %p205 = pneg %p204
      $region30: #{gcn_encoder_graph_forward.5} parent=5 // pred_check_branch
        %207 = sbr.rel (%p205) target = $region32
      $region31: #{gcn_encoder_graph_forward.5} parent=5 // pred_region
        // Predicated region
        $region33: #{gcn_encoder_graph_forward.5} parent=31 // pred_check
          %p208 = pneg %p56
        $region34: #{gcn_encoder_graph_forward.5} parent=31 // pred_check_branch
          %210 = sbr.rel (%p208) target = $region36
        $region35: #{gcn_encoder_graph_forward.5} parent=31 // pred_region
          %s211 = sand.u32 %s46, 1
          %s212 = sand.u32 %s46, 1
          %s213 = smul.addr %s212, 8
          %s214 = scalar_lea.vmem [#allocation3], %s213
          %s215 = smul.addr %s15, 4
          %s216 = scalar_lea.vmem %s1, %s215
          // Predicated region
          $region37: #{gcn_encoder_graph_forward.5} parent=35 // pred_check
            _
          $region38: #{gcn_encoder_graph_forward.5} parent=35 // pred_check_branch
            %218 = sbr.rel (0) target = $region40
          $region39: #{gcn_encoder_graph_forward.5} parent=35 // pred_region
            // Predicated region
            $region41: #{gcn_encoder_graph_forward.5} parent=39 // pred_check
              _
            $region42: #{gcn_encoder_graph_forward.5} parent=39 // pred_check_branch
              %220 = sbr.rel target = $region44
            $region43: #{gcn_encoder_graph_forward.5} parent=39 // pred_region
              // Predicated region
              $region56: #{gcn_encoder_graph_forward.5} parent=43 // pred_check
                _
              $region57: #{gcn_encoder_graph_forward.5} parent=43 // pred_check_branch
                %237 = sbr.rel (0) target = $region59
              $region58: #{gcn_encoder_graph_forward.5} parent=43 // pred_region
                loop: start=0, step=1, limit=1
                $region60: #{gcn_encoder_graph_forward.5} parent=58 // loop_pre_header
                  _
                $region61: #{gcn_encoder_graph_forward.5} parent=58 // loop_header
                  %s239 = sphi 0, %s243
                  %p240 = scmp.ge.s32.totalorder %s239, 1
                  %s244 = sphi %s216, %s216
                  %s245 = sphi %s214, %s214
                $region62: #{gcn_encoder_graph_forward.5} parent=58 // loop_header_branch
                  %242 = sbr.rel (%p240) target = $region66
                $region63: #{gcn_encoder_graph_forward.5} parent=58 // loop_body
                  _
                $region64: #{gcn_encoder_graph_forward.5} parent=58 // loop_footer
                  %s243 = sadd.s32 1, %s239
                $region65: #{gcn_encoder_graph_forward.5} parent=58 // loop_footer_branch
                  %238 = sbr.rel target = $region61
                $region66: #{gcn_encoder_graph_forward.5} parent=58 // loop_exit
                  _
                loop: start=0, step=1, limit=1
                $region67: #{gcn_encoder_graph_forward.5} parent=58 // loop_pre_header
                  _
                $region68: #{gcn_encoder_graph_forward.5} parent=58 // loop_header
                  %s248 = sphi 0, %s252
                  %p249 = scmp.ge.s32.totalorder %s248, 1
                  %s253 = sphi %s216, %s216
                  %s254 = sphi %s214, %s214
                $region69: #{gcn_encoder_graph_forward.5} parent=58 // loop_header_branch
                  %251 = sbr.rel (%p249) target = $region73
                $region70: #{gcn_encoder_graph_forward.5} parent=58 // loop_body
                  %v255 = vld [vmem:[%s253] sm:$0xf]
                  %256 = vst [vmem:[%s254] sm:$0xf] %v255
                  %v257 = vld [vmem:[%s253 + $0x8] sm:$0xf]
                  %258 = vst [vmem:[%s254 + $0x4] sm:$0xf] %v257
                $region71: #{gcn_encoder_graph_forward.5} parent=58 // loop_footer
                  %s252 = sadd.s32 1, %s248
                $region72: #{gcn_encoder_graph_forward.5} parent=58 // loop_footer_branch
                  %247 = sbr.rel target = $region68
                $region73: #{gcn_encoder_graph_forward.5} parent=58 // loop_exit
                  _
              $region59: #{gcn_encoder_graph_forward.5} parent=43 // pred_fallthru
                _
            $region44: #{gcn_encoder_graph_forward.5} parent=39 // pred_fallthru
              _
            // Predicated region
            $region45: #{gcn_encoder_graph_forward.5} parent=39 // pred_check
              _
            $region46: #{gcn_encoder_graph_forward.5} parent=39 // pred_check_branch
              %222 = sbr.rel (0) target = $region48
            $region47: #{gcn_encoder_graph_forward.5} parent=39 // pred_region
              loop: start=0, step=1, limit=1
              $region49: #{gcn_encoder_graph_forward.5} parent=47 // loop_pre_header
                _
              $region50: #{gcn_encoder_graph_forward.5} parent=47 // loop_header
                %s225 = sphi 0, %s229
                %p226 = scmp.ge.s32.totalorder %s225, 1
                %s230 = sphi %s216, %s216
                %s231 = sphi %s214, %s214
              $region51: #{gcn_encoder_graph_forward.5} parent=47 // loop_header_branch
                %228 = sbr.rel (%p226) target = $region55
              $region52: #{gcn_encoder_graph_forward.5} parent=47 // loop_body
                %v232 = vld [vmem:[%s230] sm:$0xf]
                %233 = vst [vmem:[%s231] sm:$0xf] %v232
                %v234 = vld [vmem:[%s230 + $0x8] sm:$0xf]
                %235 = vst [vmem:[%s231 + $0x4] sm:$0xf] %v234
              $region53: #{gcn_encoder_graph_forward.5} parent=47 // loop_footer
                %s229 = sadd.s32 1, %s225
              $region54: #{gcn_encoder_graph_forward.5} parent=47 // loop_footer_branch
                %224 = sbr.rel target = $region50
              $region55: #{gcn_encoder_graph_forward.5} parent=47 // loop_exit
                _
            $region48: #{gcn_encoder_graph_forward.5} parent=39 // pred_fallthru
              _
          $region40: #{gcn_encoder_graph_forward.5} parent=35 // pred_fallthru
            _
          %259 = vnop
        $region36: #{gcn_encoder_graph_forward.5} parent=31 // pred_fallthru
          _
      $region32: #{gcn_encoder_graph_forward.5} parent=5 // pred_fallthru
        _
      %p260 = scmp.le.s32.totalorder 1, %s15
      %p261 = scmp.lt.s32.totalorder %s15, 3
      %p262 = pnand %p260, %p261
      %p263 = pneg %p262
      // Predicated region
      $region74: #{gcn_encoder_graph_forward.5} parent=5 // pred_check
        _
      $region75: #{gcn_encoder_graph_forward.5} parent=5 // pred_check_branch
        %265 = sbr.rel (%p262) target = $region77
      $region76: #{gcn_encoder_graph_forward.5} parent=5 // pred_region
        %s266 = ssub.s32 %s15, 1
        %s267 = sand.u32 %s49, 1
        %s268 = sand.u32 %s49, 1
        %s269 = smul.addr %s268, 8
        %s270 = scalar_lea.vmem [#allocation3], %s269
        // Predicated region
        $region78: #{gcn_encoder_graph_forward.5} parent=76 // pred_check
          %p271 = pneg %p62
        $region79: #{gcn_encoder_graph_forward.5} parent=76 // pred_check_branch
          %273 = sbr.rel (%p271) target = $region81
        $region80: #{gcn_encoder_graph_forward.5} parent=76 // pred_region
          _
        $region81: #{gcn_encoder_graph_forward.5} parent=76 // pred_fallthru
          _
        %p274 = pneg %p36
        %p275 = pneg %p33
        %s276 = sand.u32 %s49, 1
        %s277 = sand.u32 %s49, 1
        %s278 = smul.addr %s277, 8
        %s279 = scalar_lea.vmem [#allocation3], %s278
        %p280 = pneg %p62
        %p281 = pneg %p59
        %p282 = pneg %p83
        %p283 = pneg %p80
        %p284 = pneg %p104
        %p285 = pneg %p101
        %p286 = pneg %p125
        %p287 = pneg %p122
        %p288 = pneg %p151
        %p289 = pneg %p148
        %s290 = sand.u32 %s138, 1
        %s291 = sand.u32 %s138, 1
        %s292 = smul.addr %s291, 16
        %s293 = scalar_lea.vmem [#allocation4], %s292
        %p294 = pneg %p177
        %p295 = pneg %p174
        %p296 = scmp.lt.s32.totalorder %s20, 1
        %s297 = scalar_select %p296, %s20, 1
        %s298 = smul.addr %s297, 2
        %s299 = scalar_lea.vmem %s6, %s298
        %p300 = scmp.lt.s32.totalorder %s20, 1
        %s301 = scalar_select %p300, %s20, 1
        %s302 = smul.addr %s301, 2
        %s303 = scalar_lea.vmem %s6, %s302
        %v305 = vld [vmem:[%s270] sm:$0xf]
        %v306 = vld [vmem:[%s270 + $0x4] sm:$0xf]
        %v307 = vld [vmem:[%s0] sm:$0xff]
        %v308 = vld [vmem:[%s0 + $0x8] sm:$0xff]
        %v309 = vld [vmem:[%s0 + $0x10] sm:$0xff]
        %v310 = vld [vmem:[%s0 + $0x18] sm:$0xff]
        %v311 = vpack.c.bf16 %v308, %v307
        %v312 = vpack.c.bf16 %v310, %v309
        %vm313 = vcmask 130048
        %v315 = vsel %vm313, %v305, 0
        %317 = vmatprep.subr.bf16.mxu0 0
        %318 = vmatpush1.bf16.msra.mxu0 %v311
        %319 = vmatprep.subr.bf16.mxu0 0
        %320 = vmatpush1.bf16.msra.mxu0 0
        %321 = vmatprep.subr.bf16.mxu0 0
        %322 = vmatpush1.bf16.msra.mxu0 0
        %323 = vmatprep.subr.bf16.mxu0 0
        %324 = vmatpush1.bf16.msra.mxu0 0
        %325 = vmatprep.subr.bf16.mxu0 0
        %326 = vmatpush1.bf16.msra.mxu0 0
        %327 = vmatprep.subr.bf16.mxu0 0
        %328 = vmatpush1.bf16.msra.mxu0 0
        %329 = vmatprep.subr.bf16.mxu0 0
        %330 = vmatpush1.bf16.msra.mxu0 0
        %331 = vmatprep.subr.bf16.mxu0 0
        %332 = vmatpush1.bf16.msra.mxu0 0
        %333 = vmatprep.subr.bf16.mxu0 0
        %334 = vmatpush1.bf16.msra.mxu0 0
        %335 = vmatprep.subr.bf16.mxu0 0
        %336 = vmatpush1.bf16.msra.mxu0 0
        %337 = vmatprep.subr.bf16.mxu0 0
        %338 = vmatpush1.bf16.msra.mxu0 0
        %339 = vmatprep.subr.bf16.mxu0 0
        %340 = vmatpush1.bf16.msra.mxu0 0
        %341 = vmatprep.subr.bf16.mxu0 0
        %342 = vmatpush1.bf16.msra.mxu0 0
        %343 = vmatprep.subr.bf16.mxu0 0
        %344 = vmatpush1.bf16.msra.mxu0 0
        %345 = vmatprep.subr.bf16.mxu0 0
        %346 = vmatpush1.bf16.msra.mxu0 0
        %347 = vmatprep.subr.bf16.mxu0 0
        %348 = vmatpush1.bf16.msra.mxu0 0
        %349 = vmatprep.mubr.bf16.mxu0 0
        %350 = vmatmul.mubr.bf16.gmra.mrb[0].mxu0 %v315
        %v351 = vpop.f32.mrb[0].mxu0
        %v352 = vadd.f32 0.0, %v351
        %v353 = vpop.f32.mrb[0].mxu0
        %v354 = vpop.f32.mrb[0].mxu0
        %v355 = vpop.f32.mrb[0].mxu0
        %356 = vdwg.mxu0
        %v358 = vsel %vm313, %v306, 0
        %360 = vmatprep.subr.bf16.mxu0 0
        %361 = vmatpush1.bf16.msra.mxu0 %v312
        %362 = vmatprep.subr.bf16.mxu0 0
        %363 = vmatpush1.bf16.msra.mxu0 0
        %364 = vmatprep.subr.bf16.mxu0 0
        %365 = vmatpush1.bf16.msra.mxu0 0
        %366 = vmatprep.subr.bf16.mxu0 0
        %367 = vmatpush1.bf16.msra.mxu0 0
        %368 = vmatprep.subr.bf16.mxu0 0
        %369 = vmatpush1.bf16.msra.mxu0 0
        %370 = vmatprep.subr.bf16.mxu0 0
        %371 = vmatpush1.bf16.msra.mxu0 0
        %372 = vmatprep.subr.bf16.mxu0 0
        %373 = vmatpush1.bf16.msra.mxu0 0
        %374 = vmatprep.subr.bf16.mxu0 0
        %375 = vmatpush1.bf16.msra.mxu0 0
        %376 = vmatprep.subr.bf16.mxu0 0
        %377 = vmatpush1.bf16.msra.mxu0 0
        %378 = vmatprep.subr.bf16.mxu0 0
        %379 = vmatpush1.bf16.msra.mxu0 0
        %380 = vmatprep.subr.bf16.mxu0 0
        %381 = vmatpush1.bf16.msra.mxu0 0
        %382 = vmatprep.subr.bf16.mxu0 0
        %383 = vmatpush1.bf16.msra.mxu0 0
        %384 = vmatprep.subr.bf16.mxu0 0
        %385 = vmatpush1.bf16.msra.mxu0 0
        %386 = vmatprep.subr.bf16.mxu0 0
        %387 = vmatpush1.bf16.msra.mxu0 0
        %388 = vmatprep.subr.bf16.mxu0 0
        %389 = vmatpush1.bf16.msra.mxu0 0
        %390 = vmatprep.subr.bf16.mxu0 0
        %391 = vmatpush1.bf16.msra.mxu0 0
        %392 = vmatprep.mubr.bf16.mxu0 0
        %393 = vmatmul.mubr.bf16.gmra.mrb[0].mxu0 %v358
        %v394 = vpop.f32.mrb[0].mxu0
        %v395 = vadd.f32 0.0, %v394
        %v396 = vpop.f32.mrb[0].mxu0
        %v397 = vpop.f32.mrb[0].mxu0
        %v398 = vpop.f32.mrb[0].mxu0
        %399 = vdwg.mxu0
        %v400 = vpack.c.bf16 %v395, %v352
        %v401 = vld [vmem:[%s2] sm:$0xf]
        %v402 = vld [vmem:[%s2 + $0x4] sm:$0xf]
        %v403 = vld [vmem:[%s2 + $0x8] sm:$0xf]
        %v404 = vld [vmem:[%s2 + $0xc] sm:$0xf]
        %v409 = vunpack.c.l.b16 %v401
        %v410 = vunpack.c.l.b16 %v402
        %v411 = vunpack.c.l.b16 %v403
        %v412 = vunpack.c.l.b16 %v404
        %v413 = vpack.c.b16 %v410, %v409
        %v414 = vpack.c.b16 %v412, %v411
        %vm417 = vcmask 261120
        %v419 = vsel %vm417, %v400, 0
        %421 = vmatprep.subr.bf16.mxu0 0
        %422 = vmatpush1.bf16.msra.mxu0 %v413
        %423 = vmatprep.subr.bf16.mxu0 0
        %424 = vmatpush1.bf16.msra.mxu0 %v414
        %425 = vmatprep.subr.bf16.mxu0 0
        %426 = vmatpush1.bf16.msra.mxu0 0
        %427 = vmatprep.subr.bf16.mxu0 0
        %428 = vmatpush1.bf16.msra.mxu0 0
        %429 = vmatprep.subr.bf16.mxu0 0
        %430 = vmatpush1.bf16.msra.mxu0 0
        %431 = vmatprep.subr.bf16.mxu0 0
        %432 = vmatpush1.bf16.msra.mxu0 0
        %433 = vmatprep.subr.bf16.mxu0 0
        %434 = vmatpush1.bf16.msra.mxu0 0
        %435 = vmatprep.subr.bf16.mxu0 0
        %436 = vmatpush1.bf16.msra.mxu0 0
        %437 = vmatprep.subr.bf16.mxu0 0
        %438 = vmatpush1.bf16.msra.mxu0 0
        %439 = vmatprep.subr.bf16.mxu0 0
        %440 = vmatpush1.bf16.msra.mxu0 0
        %441 = vmatprep.subr.bf16.mxu0 0
        %442 = vmatpush1.bf16.msra.mxu0 0
        %443 = vmatprep.subr.bf16.mxu0 0
        %444 = vmatpush1.bf16.msra.mxu0 0
        %445 = vmatprep.subr.bf16.mxu0 0
        %446 = vmatpush1.bf16.msra.mxu0 0
        %447 = vmatprep.subr.bf16.mxu0 0
        %448 = vmatpush1.bf16.msra.mxu0 0
        %449 = vmatprep.subr.bf16.mxu0 0
        %450 = vmatpush1.bf16.msra.mxu0 0
        %451 = vmatprep.subr.bf16.mxu0 0
        %452 = vmatpush1.bf16.msra.mxu0 0
        %453 = vmatprep.mubr.bf16.mxu0 0
        %454 = vmatmul.mubr.bf16.gmra.mrb[0].mxu0 %v419
        %v455 = vpop.f32.mrb[0].mxu0
        %v456 = vadd.f32 0.0, %v455
        %v457 = vpop.f32.mrb[0].mxu0
        %v458 = vpop.f32.mrb[0].mxu0
        %v459 = vadd.f32 0.0, %v458
        %v460 = vpop.f32.mrb[0].mxu0
        %461 = vdwg.mxu0
        %v462 = vld [vmem:[%s3] sm:$0x1]
        %v464 = vlaneseq
        %v465 = vshrl.u32 %v464, 7
        %v466 = vsub.s32 0, %v465
        %v467 = vrot.slane %v462, %v466
        %v469 = vadd.f32 %v456, %v467
        %v470 = vadd.f32 %v459, %v467
        %v471 = vld [vmem:[#allocation2] sm:$0x1]
        %s472 = vtos %v471
        %vm473 = vcmp.ge.f32.partialorder %v469, 0.0
        %vm474 = vcmp.ge.f32.partialorder %v470, 0.0
        %v475 = vstv %s472
        %v476 = vmul.f32 %v475, %v469
        %v477 = vmul.f32 %v475, %v470
        %v478 = vsel %vm473, %v469, %v476
        %v479 = vsel %vm474, %v470, %v477
        %v480 = vmax.f32 %v478, 0.0
        %v481 = vmax.f32 %v479, 0.0
        %v482 = vsel %vm417, %v480, 0.0
        %v483 = vsel %vm417, %v481, 0.0
        %v484 = vadd.f32 %v482, %v483
        %485 = vadd.xlane.f32.xlu0 %v484
        %v486 = vpop.xlane.xlu0 %485
        %v487 = vrcp.pop 64.0
        %v488 = vmul.f32 %v486, %v487
        %v489 = vsub.f32 %v480, %v488
        %v490 = vsub.f32 %v481, %v488
        %v491 = vmul.f32 %v489, %v489
        %v492 = vmul.f32 %v490, %v490
        %v493 = vsel %vm417, %v491, 0.0
        %v494 = vsel %vm417, %v492, 0.0
        %v495 = vadd.f32 %v493, %v494
        %496 = vadd.xlane.f32.xlu0 %v495
        %v497 = vpop.xlane.xlu0 %496
        %v498 = vmul.f32 %v497, %v487
        %v499 = vadd.f32 %v498, 1e-05
        %v500 = vrsqrt.pop %v499
        %v501 = vmul.f32 %v489, %v500
        %v502 = vmul.f32 %v490, %v500
        %503 = vst.msk [vmem:[%s293] sm:$0xff] %vm417, %v501
        %504 = vst.msk [vmem:[%s293 + $0x8] sm:$0xff] %vm417, %v502
        %v505 = vsel %vm417, %v501, -inf
        %v506 = vrot.slane %v505, 4
        %v507 = vmax.f32 %v505, %v506
        %v508 = vrot.slane %v507, 2
        %v509 = vmax.f32 %v507, %v508
        %v510 = vrot.slane %v509, 1
        %v511 = vmax.f32 %v509, %v510
        %v512 = vsel %vm417, %v502, -inf
        %v513 = vrot.slane %v512, 4
        %v514 = vmax.f32 %v512, %v513
        %v515 = vrot.slane %v514, 2
        %v516 = vmax.f32 %v514, %v515
        %v517 = vrot.slane %v516, 1
        %v518 = vmax.f32 %v516, %v517
        %vm521 = vcmask 1041409
        %v522 = vsel %vm521, %v518, %v511
        %vm524 = vcmask 254976
        %525 = vst.msk [vmem:[%s303] sm:$0x3] %vm524, %v522
        %s526 = sand.u32 %s138, 1
        %s527 = sand.u32 %s138, 1
        %s528 = smul.addr %s527, 16
        %s529 = scalar_lea.vmem [#allocation4], %s528
        %p530 = scmp.lt.s32.totalorder %s20, 1
        %s531 = scalar_select %p530, %s20, 1
        %s532 = smul.addr %s531, 2
        %s533 = scalar_lea.vmem %s6, %s532
        // Predicated region
        $region82: #{gcn_encoder_graph_forward.5} parent=76 // pred_check
          %p534 = pneg %p148
        $region83: #{gcn_encoder_graph_forward.5} parent=76 // pred_check_branch
          %536 = sbr.rel (%p534) target = $region85
        $region84: #{gcn_encoder_graph_forward.5} parent=76 // pred_region
          %s537 = smul.addr %s20, 8
          %s538 = scalar_lea.vmem %s5, %s537
          // Predicated region
          $region86: #{gcn_encoder_graph_forward.5} parent=84 // pred_check
            _
          $region87: #{gcn_encoder_graph_forward.5} parent=84 // pred_check_branch
            %540 = sbr.rel (0) target = $region89
          $region88: #{gcn_encoder_graph_forward.5} parent=84 // pred_region
            // Predicated region
            $region90: #{gcn_encoder_graph_forward.5} parent=88 // pred_check
              _
            $region91: #{gcn_encoder_graph_forward.5} parent=88 // pred_check_branch
              %542 = sbr.rel (0) target = $region93
            $region92: #{gcn_encoder_graph_forward.5} parent=88 // pred_region
              // Predicated region
              $region105: #{gcn_encoder_graph_forward.5} parent=92 // pred_check
                _
              $region106: #{gcn_encoder_graph_forward.5} parent=92 // pred_check_branch
                %559 = sbr.rel (0) target = $region108
              $region107: #{gcn_encoder_graph_forward.5} parent=92 // pred_region
                loop: start=0, step=1, limit=1
                $region109: #{gcn_encoder_graph_forward.5} parent=107 // loop_pre_header
                  _
                $region110: #{gcn_encoder_graph_forward.5} parent=107 // loop_header
                  %s561 = sphi 0, %s565
                  %p562 = scmp.ge.s32.totalorder %s561, 1
                  %s566 = sphi %s529, %s529
                  %s567 = sphi %s538, %s538
                $region111: #{gcn_encoder_graph_forward.5} parent=107 // loop_header_branch
                  %564 = sbr.rel (%p562) target = $region115
                $region112: #{gcn_encoder_graph_forward.5} parent=107 // loop_body
                  %v568 = vld [vmem:[%s566] sm:$0xff]
                  %569 = vst [vmem:[%s567] sm:$0xff] %v568
                  %v570 = vld [vmem:[%s566 + $0x8] sm:$0xff]
                  %571 = vst [vmem:[%s567 + $0x10] sm:$0xff] %v570
                $region113: #{gcn_encoder_graph_forward.5} parent=107 // loop_footer
                  %s565 = sadd.s32 1, %s561
                $region114: #{gcn_encoder_graph_forward.5} parent=107 // loop_footer_branch
                  %560 = sbr.rel target = $region110
                $region115: #{gcn_encoder_graph_forward.5} parent=107 // loop_exit
                  _
              $region108: #{gcn_encoder_graph_forward.5} parent=92 // pred_fallthru
                _
              // Predicated region
              $region116: #{gcn_encoder_graph_forward.5} parent=92 // pred_check
                _
              $region117: #{gcn_encoder_graph_forward.5} parent=92 // pred_check_branch
                %573 = sbr.rel target = $region119
              $region118: #{gcn_encoder_graph_forward.5} parent=92 // pred_region
                _
              $region119: #{gcn_encoder_graph_forward.5} parent=92 // pred_fallthru
                _
            $region93: #{gcn_encoder_graph_forward.5} parent=88 // pred_fallthru
              _
            // Predicated region
            $region94: #{gcn_encoder_graph_forward.5} parent=88 // pred_check
              _
            $region95: #{gcn_encoder_graph_forward.5} parent=88 // pred_check_branch
              %544 = sbr.rel target = $region97
            $region96: #{gcn_encoder_graph_forward.5} parent=88 // pred_region
              loop: start=0, step=1, limit=1
              $region98: #{gcn_encoder_graph_forward.5} parent=96 // loop_pre_header
                _
              $region99: #{gcn_encoder_graph_forward.5} parent=96 // loop_header
                %s547 = sphi 0, %s551
                %p548 = scmp.ge.s32.totalorder %s547, 1
                %s552 = sphi %s529, %s529
                %s553 = sphi %s538, %s538
              $region100: #{gcn_encoder_graph_forward.5} parent=96 // loop_header_branch
                %550 = sbr.rel (%p548) target = $region104
              $region101: #{gcn_encoder_graph_forward.5} parent=96 // loop_body
                %v554 = vld [vmem:[%s552] sm:$0xff]
                %555 = vst [vmem:[%s553] sm:$0xff] %v554
                %v556 = vld [vmem:[%s552 + $0x8] sm:$0xff]
                %557 = vst [vmem:[%s553 + $0x10] sm:$0xff] %v556
              $region102: #{gcn_encoder_graph_forward.5} parent=96 // loop_footer
                %s551 = sadd.s32 1, %s547
              $region103: #{gcn_encoder_graph_forward.5} parent=96 // loop_footer_branch
                %546 = sbr.rel target = $region99
              $region104: #{gcn_encoder_graph_forward.5} parent=96 // loop_exit
                _
            $region97: #{gcn_encoder_graph_forward.5} parent=88 // pred_fallthru
              _
          $region89: #{gcn_encoder_graph_forward.5} parent=84 // pred_fallthru
            _
          %574 = vnop
        $region85: #{gcn_encoder_graph_forward.5} parent=76 // pred_fallthru
          _
        // Predicated region
        $region120: #{gcn_encoder_graph_forward.5} parent=76 // pred_check
          %p575 = pneg %p174
        $region121: #{gcn_encoder_graph_forward.5} parent=76 // pred_check_branch
          %577 = sbr.rel (%p575) target = $region123
        $region122: #{gcn_encoder_graph_forward.5} parent=76 // pred_region
          _
        $region123: #{gcn_encoder_graph_forward.5} parent=76 // pred_fallthru
          _
      $region77: #{gcn_encoder_graph_forward.5} parent=5 // pred_fallthru
        _
      %p578 = scmp.le.s32.totalorder 2, %s15
      // Predicated region
      $region124: #{gcn_encoder_graph_forward.5} parent=5 // pred_check
        %p579 = pneg %p578
      $region125: #{gcn_encoder_graph_forward.5} parent=5 // pred_check_branch
        %581 = sbr.rel (%p579) target = $region127
      $region126: #{gcn_encoder_graph_forward.5} parent=5 // pred_region
        %s582 = ssub.s32 %s15, 2
        // Predicated region
        $region128: #{gcn_encoder_graph_forward.5} parent=126 // pred_check
          %p583 = pneg %p154
        $region129: #{gcn_encoder_graph_forward.5} parent=126 // pred_check_branch
          %585 = sbr.rel (%p583) target = $region131
        $region130: #{gcn_encoder_graph_forward.5} parent=126 // pred_region
          %s586 = sand.u32 %s139, 1
          %s587 = sand.u32 %s139, 1
          %s588 = smul.addr %s587, 16
          %s589 = scalar_lea.vmem [#allocation4], %s588
        $region131: #{gcn_encoder_graph_forward.5} parent=126 // pred_fallthru
          _
        // Predicated region
        $region132: #{gcn_encoder_graph_forward.5} parent=126 // pred_check
          %p590 = pneg %p180
        $region133: #{gcn_encoder_graph_forward.5} parent=126 // pred_check_branch
          %592 = sbr.rel (%p590) target = $region135
        $region134: #{gcn_encoder_graph_forward.5} parent=126 // pred_region
          %p593 = scmp.lt.s32.totalorder %s21, 1
          %s594 = scalar_select %p593, %s21, 1
          %s595 = smul.addr %s594, 2
          %s596 = scalar_lea.vmem %s6, %s595
        $region135: #{gcn_encoder_graph_forward.5} parent=126 // pred_fallthru
          _
      $region127: #{gcn_encoder_graph_forward.5} parent=5 // pred_fallthru
        _
    $region6: #{gcn_encoder_graph_forward.5} parent=1 // loop_footer
      %s19 = sadd.s32 1, %s15
    $region7: #{gcn_encoder_graph_forward.5} parent=1 // loop_footer_branch
      %14 = sbr.rel target = $region3
    $region8: #{gcn_encoder_graph_forward.5} parent=1 // loop_exit
      _

// kernel: gcn_encoder_graph_forward.4
$region0: #{gcn_encoder_graph_forward.4}
  #allocation0 [shape = 'u32[]', space=smem, size = 0x4, offset = 0x4, fixed_abs, tag = 'smem constant byte address 0x4 - core index']
  #allocation1 [shape = 'u32[144,128]{1,0:T(1,128)}', space=vmem, size = 0x12000, scoped, tag = 'internal scratch']
  #allocation2 [shape = 'f32[1,1]{1,0:T(1,128)S(1)}', space=vmem, size = 0x200, scoped, tag = 'scoped memory for gcn_encoder_graph_forward.4']
  %s0 = inlined_call_operand.vmem [shape: f32[2,16,8], index: 0, kind: input, shape index: {}]
  %s1 = inlined_call_operand.vmem [shape: bf16[2,16,16], index: 1, kind: input, shape index: {}]
  %s2 = inlined_call_operand.vmem [shape: bf16[8,32], index: 2, kind: input, shape index: {}]
  %s3 = inlined_call_operand.vmem [shape: f32[1,32], index: 3, kind: input, shape index: {}]
  %s4 = inlined_call_operand.<no memory space> [shape: f32[1,1], index: 4, kind: input, shape index: {}]
  %s5 = inlined_call_operand.vmem [shape: f32[2,16,32], index: 5, kind: output, shape index: {0}]
  %s6 = inlined_call_operand.vmem [shape: f32[2,2,32], index: 6, kind: output, shape index: {1}]
  %7 = xla_tuple %s5, %s6
  %s8 = sld [smem:[#allocation0]]
  $region136: #{gcn_encoder_graph_forward.4} parent=0
    _
  %s10 = ssub.s32 1, %s8
  %s11 = scalar_select 0, %s10, %s8
  %v12 = vstv %s4
  %13 = vst [vmem:[#allocation2] sm:$0x1] %v12
  $region1: #{gcn_encoder_graph_forward.4} parent=0
    #allocation3 [shape = 'u8[8192]{0}', space=vmem, size = 0x2000, scoped, tag = 'input window, operand 1']
    #allocation4 [shape = 'u8[16384]{0}', space=vmem, size = 0x4000, scoped, tag = 'output window, operand 0']
    loop: start=0, step=1, limit=4
    $region2: #{gcn_encoder_graph_forward.4} parent=1 // loop_pre_header
      _
    $region3: #{gcn_encoder_graph_forward.4} parent=1 // loop_header
      %s15 = sphi 0, %s19
      %p16 = scmp.ge.s32.totalorder %s15, 4
      %s23 = sphi 0, %s23
      %s25 = sphi 0, %s23
      %s26 = sphi 0, %s25
      %s40 = sphi 0, %s26
      %s46 = sphi 0, %s48
      %s49 = sphi 0, %s46
      %s50 = sphi 0, %s49
      %s66 = sphi 0, %s50
      %s70 = sphi 0, %s70
      %s72 = sphi 0, %s70
      %s73 = sphi 0, %s72
      %s87 = sphi 0, %s73
      %s91 = sphi 0, %s91
      %s93 = sphi 0, %s91
      %s94 = sphi 0, %s93
      %s108 = sphi 0, %s94
      %s112 = sphi 0, %s112
      %s114 = sphi 0, %s112
      %s115 = sphi 0, %s114
      %s129 = sphi 0, %s115
      %s135 = sphi 0, %s137
      %s138 = sphi 0, %s135
      %s139 = sphi 0, %s138
      %s155 = sphi 0, %s139
      %s161 = sphi 0, %s163
      %s164 = sphi 0, %s161
      %s165 = sphi 0, %s164
      %s181 = sphi 0, %s165
    $region4: #{gcn_encoder_graph_forward.4} parent=1 // loop_header_branch
      %18 = sbr.rel (%p16) target = $region8
    $region5: #{gcn_encoder_graph_forward.4} parent=1 // loop_body
      %s20 = ssub.s32 %s15, 1
      %s21 = ssub.s32 %s15, 2
      %s22 = sadd.s32 %s15, 1
      %s24 = sadd.s32 %s23, 1
      %p27 = scmp.eq.s32.totalorder %s15, 1
      %p28 = scmp.ne.s32.totalorder %s23, %s25
      %p29 = scmp.eq.s32.totalorder %s15, 0
      %p30 = por %p28, %p29
      %p31 = scmp.ne.s32.totalorder %s23, %s25
      %p32 = scmp.eq.s32.totalorder %s20, 1
      %p33 = por %p31, %p32
      %p34 = scmp.ne.s32.totalorder %s25, %s26
      %p35 = scmp.eq.s32.totalorder %s20, 0
      %p36 = por %p34, %p35
      %p37 = scmp.ne.s32.totalorder %s25, %s26
      %p38 = scmp.eq.s32.totalorder %s21, 1
      %p39 = por %p37, %p38
      %p41 = scmp.ne.s32.totalorder %s26, %s40
      %p42 = scmp.eq.s32.totalorder %s21, 0
      %p43 = por %p41, %p42
      %s44 = ssub.s32 %s15, %s22
      %p45 = scmp.eq.s32.totalorder %s44, 0
      %s47 = sadd.s32 %s46, 1
      %s48 = scalar_select %p45, %s46, %s47
      %p51 = pneg %p45
      %p52 = scmp.eq.s32.totalorder %s15, 1
      %p53 = por %p51, %p52
      %p54 = scmp.ne.s32.totalorder %s46, %s49
      %p55 = scmp.eq.s32.totalorder %s15, 0
      %p56 = por %p54, %p55
      %p57 = scmp.ne.s32.totalorder %s46, %s49
      %p58 = scmp.eq.s32.totalorder %s20, 1
      %p59 = por %p57, %p58
      %p60 = scmp.ne.s32.totalorder %s49, %s50
      %p61 = scmp.eq.s32.totalorder %s20, 0
      %p62 = por %p60, %p61
      %p63 = scmp.ne.s32.totalorder %s49, %s50
      %p64 = scmp.eq.s32.totalorder %s21, 1
      %p65 = por %p63, %p64
      %p67 = scmp.ne.s32.totalorder %s50, %s66
      %p68 = scmp.eq.s32.totalorder %s21, 0
      %p69 = por %p67, %p68
      %s71 = sadd.s32 %s70, 1
      %p74 = scmp.eq.s32.totalorder %s15, 1
      %p75 = scmp.ne.s32.totalorder %s70, %s72
      %p76 = scmp.eq.s32.totalorder %s15, 0
      %p77 = por %p75, %p76
      %p78 = scmp.ne.s32.totalorder %s70, %s72
      %p79 = scmp.eq.s32.totalorder %s20, 1
      %p80 = por %p78, %p79
      %p81 = scmp.ne.s32.totalorder %s72, %s73
      %p82 = scmp.eq.s32.totalorder %s20, 0
      %p83 = por %p81, %p82
      %p84 = scmp.ne.s32.totalorder %s72, %s73
      %p85 = scmp.eq.s32.totalorder %s21, 1
      %p86 = por %p84, %p85
      %p88 = scmp.ne.s32.totalorder %s73, %s87
      %p89 = scmp.eq.s32.totalorder %s21, 0
      %p90 = por %p88, %p89
      %s92 = sadd.s32 %s91, 1
      %p95 = scmp.eq.s32.totalorder %s15, 1
      %p96 = scmp.ne.s32.totalorder %s91, %s93
      %p97 = scmp.eq.s32.totalorder %s15, 0
      %p98 = por %p96, %p97
      %p99 = scmp.ne.s32.totalorder %s91, %s93
      %p100 = scmp.eq.s32.totalorder %s20, 1
      %p101 = por %p99, %p100
      %p102 = scmp.ne.s32.totalorder %s93, %s94
      %p103 = scmp.eq.s32.totalorder %s20, 0
      %p104 = por %p102, %p103
      %p105 = scmp.ne.s32.totalorder %s93, %s94
      %p106 = scmp.eq.s32.totalorder %s21, 1
      %p107 = por %p105, %p106
      %p109 = scmp.ne.s32.totalorder %s94, %s108
      %p110 = scmp.eq.s32.totalorder %s21, 0
      %p111 = por %p109, %p110
      %s113 = sadd.s32 %s112, 1
      %p116 = scmp.eq.s32.totalorder %s15, 1
      %p117 = scmp.ne.s32.totalorder %s112, %s114
      %p118 = scmp.eq.s32.totalorder %s15, 0
      %p119 = por %p117, %p118
      %p120 = scmp.ne.s32.totalorder %s112, %s114
      %p121 = scmp.eq.s32.totalorder %s20, 1
      %p122 = por %p120, %p121
      %p123 = scmp.ne.s32.totalorder %s114, %s115
      %p124 = scmp.eq.s32.totalorder %s20, 0
      %p125 = por %p123, %p124
      %p126 = scmp.ne.s32.totalorder %s114, %s115
      %p127 = scmp.eq.s32.totalorder %s21, 1
      %p128 = por %p126, %p127
      %p130 = scmp.ne.s32.totalorder %s115, %s129
      %p131 = scmp.eq.s32.totalorder %s21, 0
      %p132 = por %p130, %p131
      %s133 = ssub.s32 %s15, %s22
      %p134 = scmp.eq.s32.totalorder %s133, 0
      %s136 = sadd.s32 %s135, 1
      %s137 = scalar_select %p134, %s135, %s136
      %p140 = pneg %p134
      %p141 = scmp.eq.s32.totalorder %s15, 1
      %p142 = por %p140, %p141
      %p143 = scmp.ne.s32.totalorder %s135, %s138
      %p144 = scmp.eq.s32.totalorder %s15, 0
      %p145 = por %p143, %p144
      %p146 = scmp.ne.s32.totalorder %s135, %s138
      %p147 = scmp.eq.s32.totalorder %s20, 1
      %p148 = por %p146, %p147
      %p149 = scmp.ne.s32.totalorder %s138, %s139
      %p150 = scmp.eq.s32.totalorder %s20, 0
      %p151 = por %p149, %p150
      %p152 = scmp.ne.s32.totalorder %s138, %s139
      %p153 = scmp.eq.s32.totalorder %s21, 1
      %p154 = por %p152, %p153
      %p156 = scmp.ne.s32.totalorder %s139, %s155
      %p157 = scmp.eq.s32.totalorder %s21, 0
      %p158 = por %p156, %p157
      %s159 = ssub.s32 %s15, %s22
      %p160 = scmp.eq.s32.totalorder %s159, 0
      %s162 = sadd.s32 %s161, 1
      %s163 = scalar_select %p160, %s161, %s162
      %p166 = pneg %p160
      %p167 = scmp.eq.s32.totalorder %s15, 1
      %p168 = por %p166, %p167
      %p169 = scmp.ne.s32.totalorder %s161, %s164
      %p170 = scmp.eq.s32.totalorder %s15, 0
      %p171 = por %p169, %p170
      %p172 = scmp.ne.s32.totalorder %s161, %s164
      %p173 = scmp.eq.s32.totalorder %s20, 1
      %p174 = por %p172, %p173
      %p175 = scmp.ne.s32.totalorder %s164, %s165
      %p176 = scmp.eq.s32.totalorder %s20, 0
      %p177 = por %p175, %p176
      %p178 = scmp.ne.s32.totalorder %s164, %s165
      %p179 = scmp.eq.s32.totalorder %s21, 1
      %p180 = por %p178, %p179
      %p182 = scmp.ne.s32.totalorder %s165, %s181
      %p183 = scmp.eq.s32.totalorder %s21, 0
      %p184 = por %p182, %p183
      %p185 = scmp.le.s32.totalorder 1, %s15
      %p186 = scmp.lt.s32.totalorder %s15, 3
      %p187 = pnand %p185, %p186
      %p188 = pneg %p187
      // Predicated region
      $region9: #{gcn_encoder_graph_forward.4} parent=5 // pred_check
        _
      $region10: #{gcn_encoder_graph_forward.4} parent=5 // pred_check_branch
        %190 = sbr.rel (%p187) target = $region12
      $region11: #{gcn_encoder_graph_forward.4} parent=5 // pred_region
        %s191 = ssub.s32 %s15, 1
        // Predicated region
        $region13: #{gcn_encoder_graph_forward.4} parent=11 // pred_check
          %p192 = pneg %p36
        $region14: #{gcn_encoder_graph_forward.4} parent=11 // pred_check_branch
          %194 = sbr.rel (%p192) target = $region16
        $region15: #{gcn_encoder_graph_forward.4} parent=11 // pred_region
          _
        $region16: #{gcn_encoder_graph_forward.4} parent=11 // pred_fallthru
          _
        // Predicated region
        $region17: #{gcn_encoder_graph_forward.4} parent=11 // pred_check
          %p195 = pneg %p83
        $region18: #{gcn_encoder_graph_forward.4} parent=11 // pred_check_branch
          %197 = sbr.rel (%p195) target = $region20
        $region19: #{gcn_encoder_graph_forward.4} parent=11 // pred_region
          _
        $region20: #{gcn_encoder_graph_forward.4} parent=11 // pred_fallthru
          _
        // Predicated region
        $region21: #{gcn_encoder_graph_forward.4} parent=11 // pred_check
          %p198 = pneg %p104
        $region22: #{gcn_encoder_graph_forward.4} parent=11 // pred_check_branch
          %200 = sbr.rel (%p198) target = $region24
        $region23: #{gcn_encoder_graph_forward.4} parent=11 // pred_region
          _
        $region24: #{gcn_encoder_graph_forward.4} parent=11 // pred_fallthru
          _
        // Predicated region
        $region25: #{gcn_encoder_graph_forward.4} parent=11 // pred_check
          %p201 = pneg %p125
        $region26: #{gcn_encoder_graph_forward.4} parent=11 // pred_check_branch
          %203 = sbr.rel (%p201) target = $region28
        $region27: #{gcn_encoder_graph_forward.4} parent=11 // pred_region
          _
        $region28: #{gcn_encoder_graph_forward.4} parent=11 // pred_fallthru
          _
      $region12: #{gcn_encoder_graph_forward.4} parent=5 // pred_fallthru
        _
      %p204 = scmp.lt.s32.totalorder %s15, 2
      // Predicated region
      $region29: #{gcn_encoder_graph_forward.4} parent=5 // pred_check
        %p205 = pneg %p204
      $region30: #{gcn_encoder_graph_forward.4} parent=5 // pred_check_branch
        %207 = sbr.rel (%p205) target = $region32
      $region31: #{gcn_encoder_graph_forward.4} parent=5 // pred_region
        // Predicated region
        $region33: #{gcn_encoder_graph_forward.4} parent=31 // pred_check
          %p208 = pneg %p56
        $region34: #{gcn_encoder_graph_forward.4} parent=31 // pred_check_branch
          %210 = sbr.rel (%p208) target = $region36
        $region35: #{gcn_encoder_graph_forward.4} parent=31 // pred_region
          %s211 = sand.u32 %s46, 1
          %s212 = sand.u32 %s46, 1
          %s213 = smul.addr %s212, 8
          %s214 = scalar_lea.vmem [#allocation3], %s213
          %s215 = smul.addr %s15, 4
          %s216 = scalar_lea.vmem %s1, %s215
          // Predicated region
          $region37: #{gcn_encoder_graph_forward.4} parent=35 // pred_check
            _
          $region38: #{gcn_encoder_graph_forward.4} parent=35 // pred_check_branch
            %218 = sbr.rel (0) target = $region40
          $region39: #{gcn_encoder_graph_forward.4} parent=35 // pred_region
            // Predicated region
            $region41: #{gcn_encoder_graph_forward.4} parent=39 // pred_check
              _
            $region42: #{gcn_encoder_graph_forward.4} parent=39 // pred_check_branch
              %220 = sbr.rel target = $region44
            $region43: #{gcn_encoder_graph_forward.4} parent=39 // pred_region
              // Predicated region
              $region56: #{gcn_encoder_graph_forward.4} parent=43 // pred_check
                _
              $region57: #{gcn_encoder_graph_forward.4} parent=43 // pred_check_branch
                %237 = sbr.rel (0) target = $region59
              $region58: #{gcn_encoder_graph_forward.4} parent=43 // pred_region
                loop: start=0, step=1, limit=1
                $region60: #{gcn_encoder_graph_forward.4} parent=58 // loop_pre_header
                  _
                $region61: #{gcn_encoder_graph_forward.4} parent=58 // loop_header
                  %s239 = sphi 0, %s243
                  %p240 = scmp.ge.s32.totalorder %s239, 1
                  %s244 = sphi %s216, %s216
                  %s245 = sphi %s214, %s214
                $region62: #{gcn_encoder_graph_forward.4} parent=58 // loop_header_branch
                  %242 = sbr.rel (%p240) target = $region66
                $region63: #{gcn_encoder_graph_forward.4} parent=58 // loop_body
                  _
                $region64: #{gcn_encoder_graph_forward.4} parent=58 // loop_footer
                  %s243 = sadd.s32 1, %s239
                $region65: #{gcn_encoder_graph_forward.4} parent=58 // loop_footer_branch
                  %238 = sbr.rel target = $region61
                $region66: #{gcn_encoder_graph_forward.4} parent=58 // loop_exit
                  _
                loop: start=0, step=1, limit=1
                $region67: #{gcn_encoder_graph_forward.4} parent=58 // loop_pre_header
                  _
                $region68: #{gcn_encoder_graph_forward.4} parent=58 // loop_header
                  %s248 = sphi 0, %s252
                  %p249 = scmp.ge.s32.totalorder %s248, 1
                  %s253 = sphi %s216, %s216
                  %s254 = sphi %s214, %s214
                $region69: #{gcn_encoder_graph_forward.4} parent=58 // loop_header_branch
                  %251 = sbr.rel (%p249) target = $region73
                $region70: #{gcn_encoder_graph_forward.4} parent=58 // loop_body
                  %v255 = vld [vmem:[%s253] sm:$0xf]
                  %256 = vst [vmem:[%s254] sm:$0xf] %v255
                  %v257 = vld [vmem:[%s253 + $0x8] sm:$0xf]
                  %258 = vst [vmem:[%s254 + $0x4] sm:$0xf] %v257
                $region71: #{gcn_encoder_graph_forward.4} parent=58 // loop_footer
                  %s252 = sadd.s32 1, %s248
                $region72: #{gcn_encoder_graph_forward.4} parent=58 // loop_footer_branch
                  %247 = sbr.rel target = $region68
                $region73: #{gcn_encoder_graph_forward.4} parent=58 // loop_exit
                  _
              $region59: #{gcn_encoder_graph_forward.4} parent=43 // pred_fallthru
                _
            $region44: #{gcn_encoder_graph_forward.4} parent=39 // pred_fallthru
              _
            // Predicated region
            $region45: #{gcn_encoder_graph_forward.4} parent=39 // pred_check
              _
            $region46: #{gcn_encoder_graph_forward.4} parent=39 // pred_check_branch
              %222 = sbr.rel (0) target = $region48
            $region47: #{gcn_encoder_graph_forward.4} parent=39 // pred_region
              loop: start=0, step=1, limit=1
              $region49: #{gcn_encoder_graph_forward.4} parent=47 // loop_pre_header
                _
              $region50: #{gcn_encoder_graph_forward.4} parent=47 // loop_header
                %s225 = sphi 0, %s229
                %p226 = scmp.ge.s32.totalorder %s225, 1
                %s230 = sphi %s216, %s216
                %s231 = sphi %s214, %s214
              $region51: #{gcn_encoder_graph_forward.4} parent=47 // loop_header_branch
                %228 = sbr.rel (%p226) target = $region55
              $region52: #{gcn_encoder_graph_forward.4} parent=47 // loop_body
                %v232 = vld [vmem:[%s230] sm:$0xf]
                %233 = vst [vmem:[%s231] sm:$0xf] %v232
                %v234 = vld [vmem:[%s230 + $0x8] sm:$0xf]
                %235 = vst [vmem:[%s231 + $0x4] sm:$0xf] %v234
              $region53: #{gcn_encoder_graph_forward.4} parent=47 // loop_footer
                %s229 = sadd.s32 1, %s225
              $region54: #{gcn_encoder_graph_forward.4} parent=47 // loop_footer_branch
                %224 = sbr.rel target = $region50
              $region55: #{gcn_encoder_graph_forward.4} parent=47 // loop_exit
                _
            $region48: #{gcn_encoder_graph_forward.4} parent=39 // pred_fallthru
              _
          $region40: #{gcn_encoder_graph_forward.4} parent=35 // pred_fallthru
            _
          %259 = vnop
        $region36: #{gcn_encoder_graph_forward.4} parent=31 // pred_fallthru
          _
      $region32: #{gcn_encoder_graph_forward.4} parent=5 // pred_fallthru
        _
      %p260 = scmp.le.s32.totalorder 1, %s15
      %p261 = scmp.lt.s32.totalorder %s15, 3
      %p262 = pnand %p260, %p261
      %p263 = pneg %p262
      // Predicated region
      $region74: #{gcn_encoder_graph_forward.4} parent=5 // pred_check
        _
      $region75: #{gcn_encoder_graph_forward.4} parent=5 // pred_check_branch
        %265 = sbr.rel (%p262) target = $region77
      $region76: #{gcn_encoder_graph_forward.4} parent=5 // pred_region
        %s266 = ssub.s32 %s15, 1
        %s267 = sand.u32 %s49, 1
        %s268 = sand.u32 %s49, 1
        %s269 = smul.addr %s268, 8
        %s270 = scalar_lea.vmem [#allocation3], %s269
        // Predicated region
        $region78: #{gcn_encoder_graph_forward.4} parent=76 // pred_check
          %p271 = pneg %p62
        $region79: #{gcn_encoder_graph_forward.4} parent=76 // pred_check_branch
          %273 = sbr.rel (%p271) target = $region81
        $region80: #{gcn_encoder_graph_forward.4} parent=76 // pred_region
          _
        $region81: #{gcn_encoder_graph_forward.4} parent=76 // pred_fallthru
          _
        %p274 = pneg %p36
        %p275 = pneg %p33
        %s276 = sand.u32 %s49, 1
        %s277 = sand.u32 %s49, 1
        %s278 = smul.addr %s277, 8
        %s279 = scalar_lea.vmem [#allocation3], %s278
        %p280 = pneg %p62
        %p281 = pneg %p59
        %p282 = pneg %p83
        %p283 = pneg %p80
        %p284 = pneg %p104
        %p285 = pneg %p101
        %p286 = pneg %p125
        %p287 = pneg %p122
        %p288 = pneg %p151
        %p289 = pneg %p148
        %s290 = sand.u32 %s138, 1
        %s291 = sand.u32 %s138, 1
        %s292 = smul.addr %s291, 16
        %s293 = scalar_lea.vmem [#allocation4], %s292
        %p294 = pneg %p177
        %p295 = pneg %p174
        %p296 = scmp.lt.s32.totalorder %s20, 1
        %s297 = scalar_select %p296, %s20, 1
        %s298 = smul.addr %s297, 2
        %s299 = scalar_lea.vmem %s6, %s298
        %p300 = scmp.lt.s32.totalorder %s20, 1
        %s301 = scalar_select %p300, %s20, 1
        %s302 = smul.addr %s301, 2
        %s303 = scalar_lea.vmem %s6, %s302
        %v305 = vld [vmem:[%s270] sm:$0xf]
        %v306 = vld [vmem:[%s270 + $0x4] sm:$0xf]
        %v307 = vld [vmem:[%s0] sm:$0xff]
        %v308 = vld [vmem:[%s0 + $0x8] sm:$0xff]
        %v309 = vld [vmem:[%s0 + $0x10] sm:$0xff]
        %v310 = vld [vmem:[%s0 + $0x18] sm:$0xff]
        %v311 = vpack.c.bf16 %v308, %v307
        %v312 = vpack.c.bf16 %v310, %v309
        %vm313 = vcmask 130048
        %v315 = vsel %vm313, %v305, 0
        %317 = vmatprep.subr.bf16.mxu0 0
        %318 = vmatpush1.bf16.msra.mxu0 %v311
        %319 = vmatprep.subr.bf16.mxu0 0
        %320 = vmatpush1.bf16.msra.mxu0 0
        %321 = vmatprep.subr.bf16.mxu0 0
        %322 = vmatpush1.bf16.msra.mxu0 0
        %323 = vmatprep.subr.bf16.mxu0 0
        %324 = vmatpush1.bf16.msra.mxu0 0
        %325 = vmatprep.subr.bf16.mxu0 0
        %326 = vmatpush1.bf16.msra.mxu0 0
        %327 = vmatprep.subr.bf16.mxu0 0
        %328 = vmatpush1.bf16.msra.mxu0 0
        %329 = vmatprep.subr.bf16.mxu0 0
        %330 = vmatpush1.bf16.msra.mxu0 0
        %331 = vmatprep.subr.bf16.mxu0 0
        %332 = vmatpush1.bf16.msra.mxu0 0
        %333 = vmatprep.subr.bf16.mxu0 0
        %334 = vmatpush1.bf16.msra.mxu0 0
        %335 = vmatprep.subr.bf16.mxu0 0
        %336 = vmatpush1.bf16.msra.mxu0 0
        %337 = vmatprep.subr.bf16.mxu0 0
        %338 = vmatpush1.bf16.msra.mxu0 0
        %339 = vmatprep.subr.bf16.mxu0 0
        %340 = vmatpush1.bf16.msra.mxu0 0
        %341 = vmatprep.subr.bf16.mxu0 0
        %342 = vmatpush1.bf16.msra.mxu0 0
        %343 = vmatprep.subr.bf16.mxu0 0
        %344 = vmatpush1.bf16.msra.mxu0 0
        %345 = vmatprep.subr.bf16.mxu0 0
        %346 = vmatpush1.bf16.msra.mxu0 0
        %347 = vmatprep.subr.bf16.mxu0 0
        %348 = vmatpush1.bf16.msra.mxu0 0
        %349 = vmatprep.mubr.bf16.mxu0 0
        %350 = vmatmul.mubr.bf16.gmra.mrb[0].mxu0 %v315
        %v351 = vpop.f32.mrb[0].mxu0
        %v352 = vadd.f32 0.0, %v351
        %v353 = vpop.f32.mrb[0].mxu0
        %v354 = vpop.f32.mrb[0].mxu0
        %v355 = vpop.f32.mrb[0].mxu0
        %356 = vdwg.mxu0
        %v358 = vsel %vm313, %v306, 0
        %360 = vmatprep.subr.bf16.mxu0 0
        %361 = vmatpush1.bf16.msra.mxu0 %v312
        %362 = vmatprep.subr.bf16.mxu0 0
        %363 = vmatpush1.bf16.msra.mxu0 0
        %364 = vmatprep.subr.bf16.mxu0 0
        %365 = vmatpush1.bf16.msra.mxu0 0
        %366 = vmatprep.subr.bf16.mxu0 0
        %367 = vmatpush1.bf16.msra.mxu0 0
        %368 = vmatprep.subr.bf16.mxu0 0
        %369 = vmatpush1.bf16.msra.mxu0 0
        %370 = vmatprep.subr.bf16.mxu0 0
        %371 = vmatpush1.bf16.msra.mxu0 0
        %372 = vmatprep.subr.bf16.mxu0 0
        %373 = vmatpush1.bf16.msra.mxu0 0
        %374 = vmatprep.subr.bf16.mxu0 0
        %375 = vmatpush1.bf16.msra.mxu0 0
        %376 = vmatprep.subr.bf16.mxu0 0
        %377 = vmatpush1.bf16.msra.mxu0 0
        %378 = vmatprep.subr.bf16.mxu0 0
        %379 = vmatpush1.bf16.msra.mxu0 0
        %380 = vmatprep.subr.bf16.mxu0 0
        %381 = vmatpush1.bf16.msra.mxu0 0
        %382 = vmatprep.subr.bf16.mxu0 0
        %383 = vmatpush1.bf16.msra.mxu0 0
        %384 = vmatprep.subr.bf16.mxu0 0
        %385 = vmatpush1.bf16.msra.mxu0 0
        %386 = vmatprep.subr.bf16.mxu0 0
        %387 = vmatpush1.bf16.msra.mxu0 0
        %388 = vmatprep.subr.bf16.mxu0 0
        %389 = vmatpush1.bf16.msra.mxu0 0
        %390 = vmatprep.subr.bf16.mxu0 0
        %391 = vmatpush1.bf16.msra.mxu0 0
        %392 = vmatprep.mubr.bf16.mxu0 0
        %393 = vmatmul.mubr.bf16.gmra.mrb[0].mxu0 %v358
        %v394 = vpop.f32.mrb[0].mxu0
        %v395 = vadd.f32 0.0, %v394
        %v396 = vpop.f32.mrb[0].mxu0
        %v397 = vpop.f32.mrb[0].mxu0
        %v398 = vpop.f32.mrb[0].mxu0
        %399 = vdwg.mxu0
        %v400 = vpack.c.bf16 %v395, %v352
        %v401 = vld [vmem:[%s2] sm:$0xf]
        %vm402 = vcmask 64512
        %v404 = vsel %vm402, %v400, 0
        %vm406 = vcmask 1043456
        %v408 = vsel %vm406, %v401, 0
        %410 = vmatprep.subr.bf16.mxu0 0
        %411 = vmatpush1.bf16.msra.mxu0 %v408
        %412 = vmatprep.subr.bf16.mxu0 0
        %413 = vmatpush1.bf16.msra.mxu0 0
        %414 = vmatprep.subr.bf16.mxu0 0
        %415 = vmatpush1.bf16.msra.mxu0 0
        %416 = vmatprep.subr.bf16.mxu0 0
        %417 = vmatpush1.bf16.msra.mxu0 0
        %418 = vmatprep.subr.bf16.mxu0 0
        %419 = vmatpush1.bf16.msra.mxu0 0
        %420 = vmatprep.subr.bf16.mxu0 0
        %421 = vmatpush1.bf16.msra.mxu0 0
        %422 = vmatprep.subr.bf16.mxu0 0
        %423 = vmatpush1.bf16.msra.mxu0 0
        %424 = vmatprep.subr.bf16.mxu0 0
        %425 = vmatpush1.bf16.msra.mxu0 0
        %426 = vmatprep.subr.bf16.mxu0 0
        %427 = vmatpush1.bf16.msra.mxu0 0
        %428 = vmatprep.subr.bf16.mxu0 0
        %429 = vmatpush1.bf16.msra.mxu0 0
        %430 = vmatprep.subr.bf16.mxu0 0
        %431 = vmatpush1.bf16.msra.mxu0 0
        %432 = vmatprep.subr.bf16.mxu0 0
        %433 = vmatpush1.bf16.msra.mxu0 0
        %434 = vmatprep.subr.bf16.mxu0 0
        %435 = vmatpush1.bf16.msra.mxu0 0
        %436 = vmatprep.subr.bf16.mxu0 0
        %437 = vmatpush1.bf16.msra.mxu0 0
        %438 = vmatprep.subr.bf16.mxu0 0
        %439 = vmatpush1.bf16.msra.mxu0 0
        %440 = vmatprep.subr.bf16.mxu0 0
        %441 = vmatpush1.bf16.msra.mxu0 0
        %442 = vmatprep.mubr.bf16.mxu0 0
        %443 = vmatmul.mubr.bf16.gmra.mrb[0].mxu0 %v404
        %v444 = vpop.f32.mrb[0].mxu0
        %v445 = vadd.f32 0.0, %v444
        %v446 = vpop.f32.mrb[0].mxu0
        %v447 = vpop.f32.mrb[0].mxu0
        %v448 = vadd.f32 0.0, %v447
        %v449 = vpop.f32.mrb[0].mxu0
        %450 = vdwg.mxu0
        %v451 = vld [vmem:[%s3] sm:$0x1]
        %v453 = vlaneseq
        %v454 = vshrl.u32 %v453, 7
        %v455 = vsub.s32 0, %v454
        %v456 = vrot.slane %v451, %v455
        %v458 = vadd.f32 %v445, %v456
        %v459 = vadd.f32 %v448, %v456
        %v460 = vld [vmem:[#allocation2] sm:$0x1]
        %s461 = vtos %v460
        %vm462 = vcmp.ge.f32.partialorder %v458, 0.0
        %vm463 = vcmp.ge.f32.partialorder %v459, 0.0
        %v464 = vstv %s461
        %v465 = vmul.f32 %v464, %v458
        %v466 = vmul.f32 %v464, %v459
        %v467 = vsel %vm462, %v458, %v465
        %v468 = vsel %vm463, %v459, %v466
        %v469 = vmax.f32 %v467, 0.0
        %v470 = vmax.f32 %v468, 0.0
        %vm471 = vcmask 261120
        %v472 = vsel %vm471, %v469, 0.0
        %v473 = vsel %vm471, %v470, 0.0
        %v474 = vadd.f32 %v472, %v473
        %475 = vadd.xlane.f32.xlu0 %v474
        %v476 = vpop.xlane.xlu0 %475
        %v477 = vrcp.pop 64.0
        %v478 = vmul.f32 %v476, %v477
        %v479 = vsub.f32 %v469, %v478
        %v480 = vsub.f32 %v470, %v478
        %v481 = vmul.f32 %v479, %v479
        %v482 = vmul.f32 %v480, %v480
        %v483 = vsel %vm471, %v481, 0.0
        %v484 = vsel %vm471, %v482, 0.0
        %v485 = vadd.f32 %v483, %v484
        %486 = vadd.xlane.f32.xlu0 %v485
        %v487 = vpop.xlane.xlu0 %486
        %v488 = vmul.f32 %v487, %v477
        %v489 = vadd.f32 %v488, 1e-05
        %v490 = vrsqrt.pop %v489
        %v491 = vmul.f32 %v479, %v490
        %v492 = vmul.f32 %v480, %v490
        %493 = vst.msk [vmem:[%s293] sm:$0xff] %vm471, %v491
        %494 = vst.msk [vmem:[%s293 + $0x8] sm:$0xff] %vm471, %v492
        %v495 = vsel %vm471, %v491, -inf
        %v496 = vrot.slane %v495, 4
        %v497 = vmax.f32 %v495, %v496
        %v498 = vrot.slane %v497, 2
        %v499 = vmax.f32 %v497, %v498
        %v500 = vrot.slane %v499, 1
        %v501 = vmax.f32 %v499, %v500
        %v502 = vsel %vm471, %v492, -inf
        %v503 = vrot.slane %v502, 4
        %v504 = vmax.f32 %v502, %v503
        %v505 = vrot.slane %v504, 2
        %v506 = vmax.f32 %v504, %v505
        %v507 = vrot.slane %v506, 1
        %v508 = vmax.f32 %v506, %v507
        %vm511 = vcmask 1041409
        %v512 = vsel %vm511, %v508, %v501
        %vm514 = vcmask 254976
        %515 = vst.msk [vmem:[%s303] sm:$0x3] %vm514, %v512
        %s516 = sand.u32 %s138, 1
        %s517 = sand.u32 %s138, 1
        %s518 = smul.addr %s517, 16
        %s519 = scalar_lea.vmem [#allocation4], %s518
        %p520 = scmp.lt.s32.totalorder %s20, 1
        %s521 = scalar_select %p520, %s20, 1
        %s522 = smul.addr %s521, 2
        %s523 = scalar_lea.vmem %s6, %s522
        // Predicated region
        $region82: #{gcn_encoder_graph_forward.4} parent=76 // pred_check
          %p524 = pneg %p148
        $region83: #{gcn_encoder_graph_forward.4} parent=76 // pred_check_branch
          %526 = sbr.rel (%p524) target = $region85
        $region84: #{gcn_encoder_graph_forward.4} parent=76 // pred_region
          %s527 = smul.addr %s20, 8
          %s528 = scalar_lea.vmem %s5, %s527
          // Predicated region
          $region86: #{gcn_encoder_graph_forward.4} parent=84 // pred_check
            _
          $region87: #{gcn_encoder_graph_forward.4} parent=84 // pred_check_branch
            %530 = sbr.rel (0) target = $region89
          $region88: #{gcn_encoder_graph_forward.4} parent=84 // pred_region
            // Predicated region
            $region90: #{gcn_encoder_graph_forward.4} parent=88 // pred_check
              _
            $region91: #{gcn_encoder_graph_forward.4} parent=88 // pred_check_branch
              %532 = sbr.rel (0) target = $region93
            $region92: #{gcn_encoder_graph_forward.4} parent=88 // pred_region
              // Predicated region
              $region105: #{gcn_encoder_graph_forward.4} parent=92 // pred_check
                _
              $region106: #{gcn_encoder_graph_forward.4} parent=92 // pred_check_branch
                %549 = sbr.rel (0) target = $region108
              $region107: #{gcn_encoder_graph_forward.4} parent=92 // pred_region
                loop: start=0, step=1, limit=1
                $region109: #{gcn_encoder_graph_forward.4} parent=107 // loop_pre_header
                  _
                $region110: #{gcn_encoder_graph_forward.4} parent=107 // loop_header
                  %s551 = sphi 0, %s555
                  %p552 = scmp.ge.s32.totalorder %s551, 1
                  %s556 = sphi %s519, %s519
                  %s557 = sphi %s528, %s528
                $region111: #{gcn_encoder_graph_forward.4} parent=107 // loop_header_branch
                  %554 = sbr.rel (%p552) target = $region115
                $region112: #{gcn_encoder_graph_forward.4} parent=107 // loop_body
                  %v558 = vld [vmem:[%s556] sm:$0xff]
                  %559 = vst [vmem:[%s557] sm:$0xff] %v558
                  %v560 = vld [vmem:[%s556 + $0x8] sm:$0xff]
                  %561 = vst [vmem:[%s557 + $0x10] sm:$0xff] %v560
                $region113: #{gcn_encoder_graph_forward.4} parent=107 // loop_footer
                  %s555 = sadd.s32 1, %s551
                $region114: #{gcn_encoder_graph_forward.4} parent=107 // loop_footer_branch
                  %550 = sbr.rel target = $region110
                $region115: #{gcn_encoder_graph_forward.4} parent=107 // loop_exit
                  _
              $region108: #{gcn_encoder_graph_forward.4} parent=92 // pred_fallthru
                _
              // Predicated region
              $region116: #{gcn_encoder_graph_forward.4} parent=92 // pred_check
                _
              $region117: #{gcn_encoder_graph_forward.4} parent=92 // pred_check_branch
                %563 = sbr.rel target = $region119
              $region118: #{gcn_encoder_graph_forward.4} parent=92 // pred_region
                _
              $region119: #{gcn_encoder_graph_forward.4} parent=92 // pred_fallthru
                _
            $region93: #{gcn_encoder_graph_forward.4} parent=88 // pred_fallthru
              _
            // Predicated region
            $region94: #{gcn_encoder_graph_forward.4} parent=88 // pred_check
              _
            $region95: #{gcn_encoder_graph_forward.4} parent=88 // pred_check_branch
              %534 = sbr.rel target = $region97
            $region96: #{gcn_encoder_graph_forward.4} parent=88 // pred_region
              loop: start=0, step=1, limit=1
              $region98: #{gcn_encoder_graph_forward.4} parent=96 // loop_pre_header
                _
              $region99: #{gcn_encoder_graph_forward.4} parent=96 // loop_header
                %s537 = sphi 0, %s541
                %p538 = scmp.ge.s32.totalorder %s537, 1
                %s542 = sphi %s519, %s519
                %s543 = sphi %s528, %s528
              $region100: #{gcn_encoder_graph_forward.4} parent=96 // loop_header_branch
                %540 = sbr.rel (%p538) target = $region104
              $region101: #{gcn_encoder_graph_forward.4} parent=96 // loop_body
                %v544 = vld [vmem:[%s542] sm:$0xff]
                %545 = vst [vmem:[%s543] sm:$0xff] %v544
                %v546 = vld [vmem:[%s542 + $0x8] sm:$0xff]
                %547 = vst [vmem:[%s543 + $0x10] sm:$0xff] %v546
              $region102: #{gcn_encoder_graph_forward.4} parent=96 // loop_footer
                %s541 = sadd.s32 1, %s537
              $region103: #{gcn_encoder_graph_forward.4} parent=96 // loop_footer_branch
                %536 = sbr.rel target = $region99
              $region104: #{gcn_encoder_graph_forward.4} parent=96 // loop_exit
                _
            $region97: #{gcn_encoder_graph_forward.4} parent=88 // pred_fallthru
              _
          $region89: #{gcn_encoder_graph_forward.4} parent=84 // pred_fallthru
            _
          %564 = vnop
        $region85: #{gcn_encoder_graph_forward.4} parent=76 // pred_fallthru
          _
        // Predicated region
        $region120: #{gcn_encoder_graph_forward.4} parent=76 // pred_check
          %p565 = pneg %p174
        $region121: #{gcn_encoder_graph_forward.4} parent=76 // pred_check_branch
          %567 = sbr.rel (%p565) target = $region123
        $region122: #{gcn_encoder_graph_forward.4} parent=76 // pred_region
          _
        $region123: #{gcn_encoder_graph_forward.4} parent=76 // pred_fallthru
          _
      $region77: #{gcn_encoder_graph_forward.4} parent=5 // pred_fallthru
        _
      %p568 = scmp.le.s32.totalorder 2, %s15
      // Predicated region
      $region124: #{gcn_encoder_graph_forward.4} parent=5 // pred_check
        %p569 = pneg %p568
      $region125: #{gcn_encoder_graph_forward.4} parent=5 // pred_check_branch
        %571 = sbr.rel (%p569) target = $region127
      $region126: #{gcn_encoder_graph_forward.4} parent=5 // pred_region
        %s572 = ssub.s32 %s15, 2
        // Predicated region
        $region128: #{gcn_encoder_graph_forward.4} parent=126 // pred_check
          %p573 = pneg %p154
        $region129: #{gcn_encoder_graph_forward.4} parent=126 // pred_check_branch
          %575 = sbr.rel (%p573) target = $region131
        $region130: #{gcn_encoder_graph_forward.4} parent=126 // pred_region
          %s576 = sand.u32 %s139, 1
          %s577 = sand.u32 %s139, 1
          %s578 = smul.addr %s577, 16
          %s579 = scalar_lea.vmem [#allocation4], %s578
        $region131: #{gcn_encoder_graph_forward.4} parent=126 // pred_fallthru
          _
        // Predicated region
        $region132: #{gcn_encoder_graph_forward.4} parent=126 // pred_check
          %p580 = pneg %p180
        $region133: #{gcn_encoder_graph_forward.4} parent=126 // pred_check_branch
          %582 = sbr.rel (%p580) target = $region135
        $region134: #{gcn_encoder_graph_forward.4} parent=126 // pred_region
          %p583 = scmp.lt.s32.totalorder %s21, 1
          %s584 = scalar_select %p583, %s21, 1
          %s585 = smul.addr %s584, 2
          %s586 = scalar_lea.vmem %s6, %s585
        $region135: #{gcn_encoder_graph_forward.4} parent=126 // pred_fallthru
          _
      $region127: #{gcn_encoder_graph_forward.4} parent=5 // pred_fallthru
        _
    $region6: #{gcn_encoder_graph_forward.4} parent=1 // loop_footer
      %s19 = sadd.s32 1, %s15
    $region7: #{gcn_encoder_graph_forward.4} parent=1 // loop_footer_branch
      %14 = sbr.rel target = $region3
    $region8: #{gcn_encoder_graph_forward.4} parent=1 // loop_exit
      _

// kernel: gcn_encoder_graph_forward.7
$region0: #{gcn_encoder_graph_forward.7}
  #allocation0 [shape = 'u32[]', space=smem, size = 0x4, offset = 0x4, fixed_abs, tag = 'smem constant byte address 0x4 - core index']
  #allocation1 [shape = 'u32[144,128]{1,0:T(1,128)}', space=vmem, size = 0x12000, scoped, tag = 'internal scratch']
  %s0 = inlined_call_operand.vmem [shape: f32[2,80], index: 0, kind: input, shape index: {}]
  %s1 = inlined_call_operand.vmem [shape: bf16[80,128], index: 1, kind: input, shape index: {}]
  %s2 = inlined_call_operand.vmem [shape: f32[1,128], index: 2, kind: input, shape index: {}]
  %s3 = inlined_call_operand.hbm [shape: f32[2,128], index: 3, kind: output, shape index: {}]
  %s4 = sld [smem:[#allocation0]]
  $region22: #{gcn_encoder_graph_forward.7} parent=0
    _
  %s6 = ssub.s32 1, %s4
  %s7 = scalar_select 0, %s6, %s4
  $region1: #{gcn_encoder_graph_forward.7} parent=0
    #allocation2 [shape = 'u8[1024]{0}', space=vmem, size = 0x400, scoped, tag = 'output window, operand 0, single buffered']
    #allocation3 [shape = 's32[1]{0}', space=sflag, size = 0x4, scoped, tag = 'scoped memory for gcn_encoder_graph_forward.7']
    %8 = vsyncpa [#allocation3], 0
    // Predicated region
    $region2: #{gcn_encoder_graph_forward.7} parent=1 // pred_check
      _
    $region3: #{gcn_encoder_graph_forward.7} parent=1 // pred_check_branch
      %10 = sbr.rel (0) target = $region5
    $region4: #{gcn_encoder_graph_forward.7} parent=1 // pred_region
      _
    $region5: #{gcn_encoder_graph_forward.7} parent=1 // pred_fallthru
      _
    // Predicated region
    $region6: #{gcn_encoder_graph_forward.7} parent=1 // pred_check
      _
    $region7: #{gcn_encoder_graph_forward.7} parent=1 // pred_check_branch
      %12 = sbr.rel (0) target = $region9
    $region8: #{gcn_encoder_graph_forward.7} parent=1 // pred_region
      _
    $region9: #{gcn_encoder_graph_forward.7} parent=1 // pred_fallthru
      _
    // Predicated region
    $region10: #{gcn_encoder_graph_forward.7} parent=1 // pred_check
      _
    $region11: #{gcn_encoder_graph_forward.7} parent=1 // pred_check_branch
      %14 = sbr.rel (0) target = $region13
    $region12: #{gcn_encoder_graph_forward.7} parent=1 // pred_region
      _
    $region13: #{gcn_encoder_graph_forward.7} parent=1 // pred_fallthru
      _
    %v16 = vld [vmem:[%s0] sm:$0x3]
    %v17 = vpack.c.bf16 %v16, %v16
    %v18 = vld [vmem:[%s1] sm:$0xf]
    %v19 = vld [vmem:[%s1 + $0x4] sm:$0xf]
    %v20 = vld [vmem:[%s1 + $0x8] sm:$0xf]
    %v21 = vld [vmem:[%s1 + $0xc] sm:$0xf]
    %v22 = vld [vmem:[%s1 + $0x10] sm:$0xf]
    %v23 = vld [vmem:[%s1 + $0x14] sm:$0xf]
    %v24 = vld [vmem:[%s1 + $0x18] sm:$0xf]
    %v25 = vld [vmem:[%s1 + $0x1c] sm:$0xf]
    %v26 = vld [vmem:[%s1 + $0x20] sm:$0xf]
    %v27 = vld [vmem:[%s1 + $0x24] sm:$0xf]
    %v28 = vld [vmem:[%s2] sm:$0x1]
    %v30 = vlaneseq
    %v31 = vshrl.u32 %v30, 7
    %v32 = vsub.s32 0, %v31
    %v33 = vrot.slane %v28, %v32
    %v45 = vunpack.c.l.b16 %v18
    %v46 = vunpack.c.l.b16 %v19
    %v47 = vunpack.c.l.b16 %v20
    %v48 = vunpack.c.l.b16 %v21
    %v49 = vunpack.c.l.b16 %v22
    %v50 = vunpack.c.l.b16 %v23
    %v51 = vunpack.c.l.b16 %v24
    %v52 = vunpack.c.l.b16 %v25
    %v53 = vunpack.c.l.b16 %v26
    %v54 = vunpack.c.l.b16 %v27
    %v55 = vpack.c.b16 %v46, %v45
    %v56 = vpack.c.b16 %v48, %v47
    %v57 = vpack.c.b16 %v50, %v49
    %v58 = vpack.c.b16 %v52, %v51
    %v59 = vpack.c.b16 %v54, %v53
    %vm65 = vcmask 654336
    %v67 = vsel %vm65, %v17, 0
    %69 = vmatprep.subr.bf16.mxu0 0
    %70 = vmatpush1.bf16.msra.mxu0 %v55
    %71 = vmatprep.subr.bf16.mxu0 0
    %72 = vmatpush1.bf16.msra.mxu0 %v56
    %73 = vmatprep.subr.bf16.mxu0 0
    %74 = vmatpush1.bf16.msra.mxu0 %v57
    %75 = vmatprep.subr.bf16.mxu0 0
    %76 = vmatpush1.bf16.msra.mxu0 %v58
    %77 = vmatprep.subr.bf16.mxu0 0
    %78 = vmatpush1.bf16.msra.mxu0 %v59
    %79 = vmatprep.subr.bf16.mxu0 0
    %80 = vmatpush1.bf16.msra.mxu0 0
    %81 = vmatprep.subr.bf16.mxu0 0
    %82 = vmatpush1.bf16.msra.mxu0 0
    %83 = vmatprep.subr.bf16.mxu0 0
    %84 = vmatpush1.bf16.msra.mxu0 0
    %85 = vmatprep.subr.bf16.mxu0 0
    %86 = vmatpush1.bf16.msra.mxu0 0
    %87 = vmatprep.subr.bf16.mxu0 0
    %88 = vmatpush1.bf16.msra.mxu0 0
    %89 = vmatprep.subr.bf16.mxu0 0
    %90 = vmatpush1.bf16.msra.mxu0 0
    %91 = vmatprep.subr.bf16.mxu0 0
    %92 = vmatpush1.bf16.msra.mxu0 0
    %93 = vmatprep.subr.bf16.mxu0 0
    %94 = vmatpush1.bf16.msra.mxu0 0
    %95 = vmatprep.subr.bf16.mxu0 0
    %96 = vmatpush1.bf16.msra.mxu0 0
    %97 = vmatprep.subr.bf16.mxu0 0
    %98 = vmatpush1.bf16.msra.mxu0 0
    %99 = vmatprep.subr.bf16.mxu0 0
    %100 = vmatpush1.bf16.msra.mxu0 0
    %101 = vmatprep.mubr.bf16.mxu0 0
    %102 = vmatmul.mubr.bf16.gmra.mrb[0].mxu0 %v67
    %v103 = vpop.f32.mrb[0].mxu0
    %v104 = vadd.f32 %v33, %v103
    %v105 = vpop.f32.mrb[0].mxu0
    %v106 = vpop.f32.mrb[0].mxu0
    %v107 = vpop.f32.mrb[0].mxu0
    %108 = vdwg.mxu0
    %109 = vst [vmem:[#allocation2] sm:$0x3] %v104
    // Predicated region
    $region14: #{gcn_encoder_graph_forward.7} parent=1 // pred_check
      _
    $region15: #{gcn_encoder_graph_forward.7} parent=1 // pred_check_branch
      %111 = sbr.rel (0) target = $region17
    $region16: #{gcn_encoder_graph_forward.7} parent=1 // pred_region
      %s113 = ssub.s32 32, 32
      %114 = vsyncadd [#allocation3], %s113
      %s116 = sshll.u32 [#allocation2], 4
      %s117 = int_to_ptr.vmem [resolvable:$true] %s116
      %119 = dma.vmem_to_hbm [thread:$0]  %s117, 32, %s3, [#allocation3]
    $region17: #{gcn_encoder_graph_forward.7} parent=1 // pred_fallthru
      _
    // Predicated region
    $region18: #{gcn_encoder_graph_forward.7} parent=1 // pred_check
      _
    $region19: #{gcn_encoder_graph_forward.7} parent=1 // pred_check_branch
      %121 = sbr.rel (0) target = $region21
    $region20: #{gcn_encoder_graph_forward.7} parent=1 // pred_region
      %122 = dma.done [#allocation3], 32
    $region21: #{gcn_encoder_graph_forward.7} parent=1 // pred_fallthru
      _
    %123 = vsyncpa [#allocation3], 1

</llo_original>
